<compile_context>
chip_gen: v5e
topology: v5e:2x2
jax: 0.10.0
libtpu: 0.0.40
codegen_flags: <defaults>
</compile_context>

<pallas_src>
import functools

import jax
import jax.numpy as jnp
from jax import lax
from jax.experimental import pallas as pl
from jax.experimental.pallas import tpu as pltpu


_NN = (((1,), (0,)), ((), ()))   # standard matmul
_NT = (((1,), (1,)), ((), ()))   # rhs transposed


# --------------------------------------------------------------------------
# Shared kernel pieces (online softmax over one query tile).
# --------------------------------------------------------------------------

def _init_query_tile(xq_ref, wq_ref, bq_ref, q_sc, m_sc, l_sc, acc_sc):
    """Once per (batch, query tile): project queries, reset softmax state."""
    xq = xq_ref[0].astype(jnp.bfloat16)                              # (C, TQ)
    q = lax.dot_general(wq_ref[...], xq, _NN,
                        preferred_element_type=jnp.float32)          # (Cq, TQ)
    q = q + bq_ref[...]
    # NOTE: one small XLU transpose per *query tile* (not per kv step).
    q_sc[...] = jnp.transpose(q).astype(jnp.bfloat16)                # (TQ, Cq)
    m_sc[...] = jnp.full(m_sc.shape, -jnp.inf, jnp.float32)
    l_sc[...] = jnp.zeros(l_sc.shape, jnp.float32)
    acc_sc[...] = jnp.zeros(acc_sc.shape, jnp.float32)


def _online_softmax_step(k, v, q_sc, m_sc, l_sc, acc_sc):
    """One kv tile: energy block + online-softmax update (f32 state)."""
    energy = lax.dot_general(q_sc[...], k, _NN,
                             preferred_element_type=jnp.float32)     # (TQ, TK)
    m_prev = m_sc[...]
    m_new = jnp.maximum(m_prev, jnp.max(energy, axis=-1, keepdims=True))
    alpha = jnp.exp(m_prev - m_new)                                  # (TQ, 1)
    # If profiling shows the EUP exp as the binding slot on v6e/v7x, a bf16
    # argument here (keeping l/acc in f32) roughly halves those cycles.
    p = jnp.exp(energy - m_new)                                      # (TQ, TK)
    l_sc[...] = alpha * l_sc[...] + jnp.sum(p, axis=-1, keepdims=True)
    acc_sc[...] = alpha * acc_sc[...] + lax.dot_general(
        p.astype(jnp.bfloat16), v, _NT,
        preferred_element_type=jnp.float32)                          # (TQ, C)
    m_sc[...] = m_new


def _finalize_query_tile(gamma_ref, xq_ref, out_ref, l_sc, acc_sc):
    """Last kv tile: normalize, residual add, lane-dense (C, TQ) store."""
    o = acc_sc[...] * pl.reciprocal(l_sc[...], approx=True)          # (TQ, C)
    out = gamma_ref[0] * jnp.transpose(o) + xq_ref[0]                # (C, TQ)
    out_ref[0] = out.astype(out_ref.dtype)


# --------------------------------------------------------------------------
# Path A (fused): per-step key/value projection from the bf16 x stream.
# --------------------------------------------------------------------------

def _pam_fused_kernel(gamma_ref,            # SMEM (1,)
                      xq_ref,               # VMEM (1, C, TQ) f32   query/residual
                      xkv_ref,              # VMEM (1, C, TK) bf16  kv-side stream
                      wq_ref, bq_ref,       # bf16 (Cq, C), f32 (Cq, 1)
                      wkv_ref, bkv_ref,     # bf16 (Cq+C, C), f32 (Cq+C, 1)
                      out_ref,              # VMEM (1, C, TQ) f32
                      q_sc, m_sc, l_sc, acc_sc,
                      *, cq):
    ki = pl.program_id(2)

    @pl.when(ki == 0)
    def _init():
        _init_query_tile(xq_ref, wq_ref, bq_ref, q_sc, m_sc, l_sc, acc_sc)

    # Fused key/value projection: one MXU pass over this bf16 x tile.
    kv = lax.dot_general(wkv_ref[...], xkv_ref[0], _NN,
                         preferred_element_type=jnp.float32)         # (Cq+C, TK)
    kv = kv + bkv_ref[...]
    k = kv[:cq, :].astype(jnp.bfloat16)                              # (Cq, TK)
    v = kv[cq:, :].astype(jnp.bfloat16)                              # (C,  TK)

    _online_softmax_step(k, v, q_sc, m_sc, l_sc, acc_sc)

    @pl.when(ki == pl.num_programs(2) - 1)
    def _fin():
        _finalize_query_tile(gamma_ref, xq_ref, out_ref, l_sc, acc_sc)


# --------------------------------------------------------------------------
# Path B (two-phase, default for large C): precompute K/V once, stream them.
# --------------------------------------------------------------------------

def _kv_proj_kernel(x_ref,                  # VMEM (1, C, TP) bf16
                    wkv_ref, bkv_ref,       # bf16 (Cq+C, C), f32 (Cq+C, 1)
                    k_ref, v_ref,           # bf16 (1, Cq, TP), (1, C, TP)
                    *, cq):
    kv = lax.dot_general(wkv_ref[...], x_ref[0], _NN,
                         preferred_element_type=jnp.float32)         # (Cq+C, TP)
    kv = kv + bkv_ref[...]
    k_ref[0] = kv[:cq, :].astype(k_ref.dtype)
    v_ref[0] = kv[cq:, :].astype(v_ref.dtype)


def _pam_attn_kernel(gamma_ref,             # SMEM (1,)
                     xq_ref,                # VMEM (1, C, TQ) f32
                     k_ref, v_ref,          # VMEM (1, Cq, TK), (1, C, TK) bf16
                     wq_ref, bq_ref,        # bf16 (Cq, C), f32 (Cq, 1)
                     out_ref,               # VMEM (1, C, TQ) f32
                     q_sc, m_sc, l_sc, acc_sc):
    ki = pl.program_id(2)

    @pl.when(ki == 0)
    def _init():
        _init_query_tile(xq_ref, wq_ref, bq_ref, q_sc, m_sc, l_sc, acc_sc)

    _online_softmax_step(k_ref[0], v_ref[0], q_sc, m_sc, l_sc, acc_sc)

    @pl.when(ki == pl.num_programs(2) - 1)
    def _fin():
        _finalize_query_tile(gamma_ref, xq_ref, out_ref, l_sc, acc_sc)


# --------------------------------------------------------------------------
# Wrapper
# --------------------------------------------------------------------------

def _pick_tile(hw, preferred):
    """Largest multiple of 128 <= preferred that divides hw, else the full hw."""
    t = min(preferred, hw)
    t -= t % 128
    while t >= 128:
        if hw % t == 0:
            return t
        t -= 128
    return hw   # fallback: full-extent block (legal; watch VMEM for huge HW)


def _tpu_vmem_capacity():
    """(physical VMEM bytes, detection succeeded)."""
    try:
        return int(pltpu.get_tpu_info().vmem_capacity_bytes), True
    except Exception:
        # Conservative (v7x-sized) fallback for the limit, but do not enable
        # chip-specific codegen tweaks when detection failed.
        return 64 * 1024 * 1024, False


def _wspec(shape, single_buffer):
    """Constant-index BlockSpec; single-buffered on VMEM-tight (v7x) chips."""
    index_map = lambda *_: (0,) * len(shape)
    if single_buffer:
        return pl.BlockSpec(shape, index_map, pipeline_mode=pl.Buffered(1))
    return pl.BlockSpec(shape, index_map)


def _vmem_bytes(C, Cq, TQ, TK, *, wbuf, fused):
    f32, bf16, dbuf = 4, 2, 2
    blocks = dbuf * f32 * 2 * C * TQ                     # xq + out tiles (f32)
    if fused:
        blocks += dbuf * bf16 * C * TK                   # bf16 x kv-stream tile
        weights = wbuf * (bf16 * (Cq * C + (Cq + C) * C) + f32 * (2 * Cq + C))
        temps = (f32 * (3 * TQ * TK + (Cq + C) * TK)
                 + bf16 * (TQ * TK + (Cq + C) * TK))
    else:
        blocks += dbuf * bf16 * (Cq + C) * TK            # bf16 K and V tiles
        weights = wbuf * (bf16 * Cq * C + f32 * Cq)
        temps = f32 * 3 * TQ * TK + bf16 * TQ * TK
    scratch = bf16 * TQ * Cq + f32 * (2 * TQ + TQ * C)
    return blocks + weights + scratch + temps


def pam_unit_pallas(x_nchw, params, *, tq=None, tk=None, two_phase=None):
    """x_nchw: (B, C, H, W) float32. params: dict of weights. Returns (B, C, H, W)."""
    B, C, H, W = x_nchw.shape
    HW = H * W
    Cq = params["wq"].shape[0]

    phys_vmem, chip_known = _tpu_vmem_capacity()
    v7x_like = chip_known and phys_vmem <= 80 * (1 << 20)     # 64 MiB VMEM class
    single_buf_w = v7x_like                                   # weights never change
    vmem_cap = int(min(phys_vmem - 8 * (1 << 20), 100 * (1 << 20)))
    wbuf = 1 if single_buf_w else 2

    # Chip-aware tile defaults: bigger kv tiles on 128-MiB-VMEM chips (v5e/v6e).
    if tq is None:
        tq = 512
    if tk is None:
        tk = 512 if phys_vmem <= 80 * (1 << 20) else 1024
    TQ = _pick_tile(HW, tq)
    TK = _pick_tile(HW, tk)
    # v7x has 2 TensorCores: keep at least 2 items on the parallel axes.
    if B * (HW // TQ) < 2 and TQ > 128:
        smaller = _pick_tile(HW, TQ // 2)
        if smaller < TQ:
            TQ = smaller

    if two_phase is None:
        # For big C the per-query-tile kv-projection recompute dominates;
        # precomputing K/V once per batch removes it.
        two_phase = C >= 256

    # NCHW is already channel-major over flattened pixels: reshape only.
    x_f32 = x_nchw.reshape(B, C, HW).astype(jnp.float32)      # query/residual stream
    x_bf16 = x_f32.astype(jnp.bfloat16)                       # kv-side stream (half the bytes)

    # Weights pre-cast to bf16 once (MXU operands); biases stay f32.
    wq_bf = params["wq"].astype(jnp.bfloat16)                 # (Cq, C)
    bq = params["bq"].astype(jnp.float32)                     # (Cq, 1)
    w_kv_bf = jnp.concatenate([params["wk"], params["wv"]],
                              axis=0).astype(jnp.bfloat16)    # (Cq + C, C)
    b_kv = jnp.concatenate([params["bk"], params["bv"]],
                           axis=0).astype(jnp.float32)        # (Cq + C, 1)
    gamma = params["gamma"].astype(jnp.float32)

    grid = (B, HW // TQ, HW // TK)
    attn_scratch = [
        pltpu.VMEM((TQ, Cq), jnp.bfloat16),   # projected query tile
        pltpu.VMEM((TQ, 1), jnp.float32),     # running max
        pltpu.VMEM((TQ, 1), jnp.float32),     # running sum
        pltpu.VMEM((TQ, C), jnp.float32),     # output accumulator
    ]

    if not two_phase:
        # ------------------ Path A: fused per-step kv projection -------------
        est = _vmem_bytes(C, Cq, TQ, TK, wbuf=wbuf, fused=True)
        vmem_limit = int(min(max(2 * est, 16 * (1 << 20)), vmem_cap))
        flops = B * (2 * HW * C * Cq                              # q projection
                     + (HW // TQ) * 2 * HW * C * (Cq + C)         # kv proj. recompute
                     + 2 * HW * HW * Cq + 2 * HW * HW * C)        # qk^T, attn@v
        bytes_acc = (4 * B * C * HW                               # x (q/residual) read
                     + 2 * B * (HW // TQ) * C * HW                # bf16 kv x re-stream
                     + 4 * B * C * HW                             # output write
                     + 2 * (Cq * C + (Cq + C) * C) + 4 * (2 * Cq + C + 1))
        cost = pl.CostEstimate(flops=int(flops),
                               transcendentals=int(B * HW * HW),
                               bytes_accessed=int(bytes_acc))

        grid_spec = pltpu.PrefetchScalarGridSpec(
            num_scalar_prefetch=0,
            grid=grid,
            in_specs=[
                pl.BlockSpec(memory_space=pltpu.SMEM),                       # gamma
                pl.BlockSpec((1, C, TQ), lambda b, qi, ki: (b, 0, qi)),      # x f32 (q tile)
                pl.BlockSpec((1, C, TK), lambda b, qi, ki: (b, 0, ki)),      # x bf16 (kv tile)
                _wspec((Cq, C), single_buf_w), _wspec((Cq, 1), single_buf_w),
                _wspec((Cq + C, C), single_buf_w), _wspec((Cq + C, 1), single_buf_w),
            ],
            out_specs=pl.BlockSpec((1, C, TQ), lambda b, qi, ki: (b, 0, qi)),
            scratch_shapes=attn_scratch,
        )
        out_r = pl.pallas_call(
            functools.partial(_pam_fused_kernel, cq=Cq),
            out_shape=jax.ShapeDtypeStruct((B, C, HW), jnp.float32),
            grid_spec=grid_spec,
            compiler_params=pltpu.CompilerParams(
                dimension_semantics=("parallel", "parallel", "arbitrary"),
                vmem_limit_bytes=vmem_limit),
            cost_estimate=cost,
        )(gamma, x_f32, x_bf16, wq_bf, bq, w_kv_bf, b_kv)
        return out_r.reshape(B, C, H, W)

    # ---------------------- Path B: two-phase (precomputed K/V) --------------
    # Phase 1: K (B, Cq, HW) and V (B, C, HW) in bf16, once per batch.
    TP = TK
    p1_est = (2 * 2 * (2 * C + Cq) * TP                       # bf16 in/out tiles (dbuf)
              + wbuf * (2 * (Cq + C) * C + 4 * (Cq + C))      # weights + bias
              + 4 * (Cq + C) * TP)                            # f32 kv temp
    p1_vmem = int(min(max(2 * p1_est, 16 * (1 << 20)), vmem_cap))
    p1_cost = pl.CostEstimate(
        flops=int(2 * B * HW * C * (Cq + C)),
        transcendentals=0,
        bytes_accessed=int(2 * B * C * HW + 2 * B * (Cq + C) * HW
                           + 2 * (Cq + C) * C + 4 * (Cq + C)))
    k_all, v_all = pl.pallas_call(
        functools.partial(_kv_proj_kernel, cq=Cq),
        out_shape=(jax.ShapeDtypeStruct((B, Cq, HW), jnp.bfloat16),
                   jax.ShapeDtypeStruct((B, C, HW), jnp.bfloat16)),
        grid_spec=pltpu.PrefetchScalarGridSpec(
            num_scalar_prefetch=0,
            grid=(B, HW // TP),
            in_specs=[
                pl.BlockSpec((1, C, TP), lambda b, pi: (b, 0, pi)),
                _wspec((Cq + C, C), single_buf_w), _wspec((Cq + C, 1), single_buf_w),
            ],
            out_specs=[
                pl.BlockSpec((1, Cq, TP), lambda b, pi: (b, 0, pi)),
                pl.BlockSpec((1, C, TP), lambda b, pi: (b, 0, pi)),
            ]),
        compiler_params=pltpu.CompilerParams(
            dimension_semantics=("parallel", "parallel"),
            vmem_limit_bytes=p1_vmem),
        cost_estimate=p1_cost,
    )(x_bf16, w_kv_bf, b_kv)

    # Phase 2: flash attention over precomputed bf16 K/V tiles.
    est = _vmem_bytes(C, Cq, TQ, TK, wbuf=wbuf, fused=False)
    vmem_limit = int(min(max(2 * est, 16 * (1 << 20)), vmem_cap))
    flops = B * (2 * HW * C * Cq + 2 * HW * HW * Cq + 2 * HW * HW * C)
    bytes_acc = (4 * B * C * HW                               # x (q/residual) read
                 + 2 * B * (HW // TQ) * (Cq + C) * HW         # bf16 K/V re-stream
                 + 4 * B * C * HW                             # output write
                 + 2 * Cq * C + 4 * (Cq + 1))
    cost = pl.CostEstimate(flops=int(flops),
                           transcendentals=int(B * HW * HW),
                           bytes_accessed=int(bytes_acc))

    grid_spec = pltpu.PrefetchScalarGridSpec(
        num_scalar_prefetch=0,
        grid=grid,
        in_specs=[
            pl.BlockSpec(memory_space=pltpu.SMEM),                           # gamma
            pl.BlockSpec((1, C, TQ), lambda b, qi, ki: (b, 0, qi)),          # x f32 (q tile)
            pl.BlockSpec((1, Cq, TK), lambda b, qi, ki: (b, 0, ki)),         # K bf16
            pl.BlockSpec((1, C, TK), lambda b, qi, ki: (b, 0, ki)),          # V bf16
            _wspec((Cq, C), single_buf_w), _wspec((Cq, 1), single_buf_w),
        ],
        out_specs=pl.BlockSpec((1, C, TQ), lambda b, qi, ki: (b, 0, qi)),
        scratch_shapes=attn_scratch,
    )
    out_r = pl.pallas_call(
        _pam_attn_kernel,
        out_shape=jax.ShapeDtypeStruct((B, C, HW), jnp.float32),
        grid_spec=grid_spec,
        compiler_params=pltpu.CompilerParams(
            dimension_semantics=("parallel", "parallel", "arbitrary"),
            vmem_limit_bytes=vmem_limit),
        cost_estimate=cost,
    )(gamma, x_f32, k_all, v_all, wq_bf, bq)
    return out_r.reshape(B, C, H, W)


# --------------------------------------------------------------------------
# Parameters + pure-JAX reference (mirrors the PyTorch forward exactly).
# --------------------------------------------------------------------------

def init_params(key, in_dim):
    """Same parameter shapes as PAM_Unit.__init__ (1x1 convs => (Cout, Cin) mats)."""
    cq = in_dim // 8
    ks = jax.random.split(key, 6)
    wq = jax.random.normal(ks[0], (cq, in_dim), jnp.float32) * 0.1
    bq = jax.random.normal(ks[1], (cq, 1), jnp.float32) * 0.1
    wk = jax.random.normal(ks[2], (cq, in_dim), jnp.float32) * 0.1
    bk = jax.random.normal(ks[3], (cq, 1), jnp.float32) * 0.1
    wv = jax.random.normal(ks[4], (in_dim, in_dim), jnp.float32) * 0.1
    bv = jax.random.normal(ks[5], (in_dim, 1), jnp.float32) * 0.1
    # nn.Parameter(torch.zeros(1)) -> shape (1,); deterministic nonzero value so
    # the attention branch actually contributes to the output check.
    gamma = jnp.array([0.5], jnp.float32)
    return dict(wq=wq, bq=bq, wk=wk, bk=bk, wv=wv, bv=bv, gamma=gamma)


def pam_unit_ref(x_nchw, p):
    B, C, H, W = x_nchw.shape
    HW = H * W
    xf = x_nchw.reshape(B, C, HW)                                   # (B, C, HW)
    q = jnp.einsum("ac,bci->bai", p["wq"], xf) + p["bq"]            # (B, Cq, HW)
    k = jnp.einsum("ac,bci->bai", p["wk"], xf) + p["bk"]
    v = jnp.einsum("dc,bci->bdi", p["wv"], xf) + p["bv"]            # (B, C, HW)
    energy = jnp.einsum("bai,baj->bij", q, k)                       # (B, HW, HW)
    attn = jax.nn.softmax(energy, axis=-1)
    out = jnp.einsum("bdj,bij->bdi", v, attn)                       # bmm(value, attn^T)
    out = p["gamma"][0] * out + xf
    return out.reshape(B, C, H, W)


if __name__ == "__main__":
    key = jax.random.PRNGKey(0)
    kx, kp = jax.random.split(key)

    # C must be divisible by 8 (query/key convs output C // 8 channels).
    B, C, H, W = 2, 64, 16, 16          # HW = 256 -> 2 query tiles x 2 kv tiles of 128
    x = jax.random.normal(kx, (B, C, H, W), jnp.float32)
    params = init_params(kp, C)

    ref = pam_unit_ref(x, params)

    # Exercise both code paths (fused per-step projection; two-phase K/V precompute).
    out_fused = jax.block_until_ready(
        pam_unit_pallas(x, params, tq=128, tk=128, two_phase=False))
    out_two = jax.block_until_ready(
        pam_unit_pallas(x, params, tq=128, tk=128, two_phase=True))

    for out in (out_fused, out_two):
        assert out.shape == (B, C, H, W)
        # bf16 MXU operands + approx reciprocal -> slightly looser tolerance than pure f32.
        assert jnp.allclose(out, ref, atol=5e-2, rtol=5e-2), \
            float(jnp.max(jnp.abs(out - ref)))

    print("KERNEL_OK")
</pallas_src>

<mosaic_0001>
module attributes {stable_mosaic.version = 11 : i64} {
  func.func @_pam_fused_kernel(%arg0: i32, %arg1: i32, %arg2: i32, %arg3: memref<1xf32, #tpu.memory_space<smem>>, %arg4: memref<1x64x128xf32, #tpu.memory_space<vmem>>, %arg5: memref<1x64x128xbf16, #tpu.memory_space<vmem>>, %arg6: memref<8x64xbf16, #tpu.memory_space<vmem>>, %arg7: memref<8x1xf32, #tpu.memory_space<vmem>>, %arg8: memref<72x64xbf16, #tpu.memory_space<vmem>>, %arg9: memref<72x1xf32, #tpu.memory_space<vmem>>, %arg10: memref<1x64x128xf32, #tpu.memory_space<vmem>>, %arg11: memref<128x8xbf16, #tpu.memory_space<vmem>>, %arg12: memref<128x1xf32, #tpu.memory_space<vmem>>, %arg13: memref<128x1xf32, #tpu.memory_space<vmem>>, %arg14: memref<128x64xf32, #tpu.memory_space<vmem>>) attributes {dimension_semantics = [#tpu.dimension_semantics<parallel>, #tpu.dimension_semantics<parallel>, #tpu.dimension_semantics<arbitrary>], iteration_bounds = array<i64: 2, 2, 2>, scalar_prefetch = 0 : i64, scratch_operands = 4 : i64, tpu.core_type = #tpu.core_type<tc>, window_params = [{transform_indices = @transform_0, window_bounds = array<i64: 1>}, {transform_indices = @transform_1, window_bounds = array<i64: 1, 64, 128>}, {transform_indices = @transform_2, window_bounds = array<i64: 1, 64, 128>}, {pipeline_mode = #tpu.pipeline_mode<synchronous>, transform_indices = @transform_3, window_bounds = array<i64: 8, 64>}, {pipeline_mode = #tpu.pipeline_mode<synchronous>, transform_indices = @transform_4, window_bounds = array<i64: 8, 1>}, {pipeline_mode = #tpu.pipeline_mode<synchronous>, transform_indices = @transform_5, window_bounds = array<i64: 72, 64>}, {pipeline_mode = #tpu.pipeline_mode<synchronous>, transform_indices = @transform_6, window_bounds = array<i64: 72, 1>}, {transform_indices = @transform_7, window_bounds = array<i64: 1, 64, 128>}]} {
    %c0_i32 = arith.constant 0 : i32
    %0 = arith.cmpi eq, %arg2, %c0_i32 : i32
    %1 = arith.extui %0 : i1 to i32
    %c0_i32_0 = arith.constant 0 : i32
    %2 = arith.cmpi ne, %1, %c0_i32_0 : i32
    scf.if %2 {
      %c0_26 = arith.constant 0 : index
      %c0_27 = arith.constant 0 : index
      %c0_28 = arith.constant 0 : index
      %42 = vector.load %arg4[%c0_26, %c0_27, %c0_28] : memref<1x64x128xf32, #tpu.memory_space<vmem>>, vector<1x64x128xf32>
      %43 = vector.shape_cast %42 : vector<1x64x128xf32> to vector<64x128xf32>
      %44 = arith.truncf %43 : vector<64x128xf32> to vector<64x128xbf16>
      %c0_29 = arith.constant 0 : index
      %c0_30 = arith.constant 0 : index
      %45 = vector.load %arg6[%c0_29, %c0_30] : memref<8x64xbf16, #tpu.memory_space<vmem>>, vector<8x64xbf16>
      %cst_31 = arith.constant dense<0.000000e+00> : vector<8x128xf32>
      %46 = tpu.matmul %45, %44, %cst_31 {dimension_numbers = #tpu.dot_dimension_numbers<[1], [0], [0], [1], [0, 0, 1, 1], [], []>} : vector<8x64xbf16>, vector<64x128xbf16>, vector<8x128xf32> -> vector<8x128xf32>
      %c0_32 = arith.constant 0 : index
      %c0_33 = arith.constant 0 : index
      %47 = vector.load %arg7[%c0_32, %c0_33] : memref<8x1xf32, #tpu.memory_space<vmem>>, vector<8x1xf32>
      %48 = vector.broadcast %47 : vector<8x1xf32> to vector<8x128xf32>
      %49 = arith.addf %46, %48 : vector<8x128xf32>
      %50 = tpu.transpose %49, [1, 0] : vector<8x128xf32> -> vector<128x8xf32>
      %51 = arith.truncf %50 : vector<128x8xf32> to vector<128x8xbf16>
      %c0_34 = arith.constant 0 : index
      %c0_35 = arith.constant 0 : index
      %52 = vector.load %arg11[%c0_34, %c0_35] : memref<128x8xbf16, #tpu.memory_space<vmem>>, vector<128x8xbf16>
      tpu.vector_store %arg11[%c0_34, %c0_35], %51 {strides = array<i32>} : memref<128x8xbf16, #tpu.memory_space<vmem>>, vector<128x8xbf16>,
      %cst_36 = arith.constant 0xFF800000 : f32
      %53 = vector.broadcast %cst_36 : f32 to vector<128x1xf32>
      %c0_37 = arith.constant 0 : index
      %c0_38 = arith.constant 0 : index
      %54 = vector.load %arg12[%c0_37, %c0_38] : memref<128x1xf32, #tpu.memory_space<vmem>>, vector<128x1xf32>
      tpu.vector_store %arg12[%c0_37, %c0_38], %53 {strides = array<i32>} : memref<128x1xf32, #tpu.memory_space<vmem>>, vector<128x1xf32>,
      %cst_39 = arith.constant 0.000000e+00 : f32
      %55 = vector.broadcast %cst_39 : f32 to vector<128x1xf32>
      %c0_40 = arith.constant 0 : index
      %c0_41 = arith.constant 0 : index
      %56 = vector.load %arg13[%c0_40, %c0_41] : memref<128x1xf32, #tpu.memory_space<vmem>>, vector<128x1xf32>
      tpu.vector_store %arg13[%c0_40, %c0_41], %55 {strides = array<i32>} : memref<128x1xf32, #tpu.memory_space<vmem>>, vector<128x1xf32>,
      %cst_42 = arith.constant 0.000000e+00 : f32
      %57 = vector.broadcast %cst_42 : f32 to vector<128x64xf32>
      %c0_43 = arith.constant 0 : index
      %c0_44 = arith.constant 0 : index
      %58 = vector.load %arg14[%c0_43, %c0_44] : memref<128x64xf32, #tpu.memory_space<vmem>>, vector<128x64xf32>
      tpu.vector_store %arg14[%c0_43, %c0_44], %57 {strides = array<i32>} : memref<128x64xf32, #tpu.memory_space<vmem>>, vector<128x64xf32>,
    } else {
    }
    %c0 = arith.constant 0 : index
    %c0_1 = arith.constant 0 : index
    %3 = vector.load %arg8[%c0, %c0_1] : memref<72x64xbf16, #tpu.memory_space<vmem>>, vector<72x64xbf16>
    %c0_2 = arith.constant 0 : index
    %c0_3 = arith.constant 0 : index
    %c0_4 = arith.constant 0 : index
    %4 = vector.load %arg5[%c0_2, %c0_3, %c0_4] : memref<1x64x128xbf16, #tpu.memory_space<vmem>>, vector<1x64x128xbf16>
    %5 = vector.shape_cast %4 : vector<1x64x128xbf16> to vector<64x128xbf16>
    %cst = arith.constant dense<0.000000e+00> : vector<72x128xf32>
    %6 = tpu.matmul %3, %5, %cst {dimension_numbers = #tpu.dot_dimension_numbers<[1], [0], [0], [1], [0, 0, 1, 1], [], []>} : vector<72x64xbf16>, vector<64x128xbf16>, vector<72x128xf32> -> vector<72x128xf32>
    %c0_5 = arith.constant 0 : index
    %c0_6 = arith.constant 0 : index
    %7 = vector.load %arg9[%c0_5, %c0_6] : memref<72x1xf32, #tpu.memory_space<vmem>>, vector<72x1xf32>
    %8 = vector.broadcast %7 : vector<72x1xf32> to vector<72x128xf32>
    %9 = arith.addf %6, %8 : vector<72x128xf32>
    %10 = vector.extract_strided_slice %9 {offsets = [0, 0], sizes = [8, 128], strides = [1, 1]} : vector<72x128xf32> to vector<8x128xf32>
    %11 = arith.truncf %10 : vector<8x128xf32> to vector<8x128xbf16>
    %12 = vector.extract_strided_slice %9 {offsets = [8, 0], sizes = [64, 128], strides = [1, 1]} : vector<72x128xf32> to vector<64x128xf32>
    %13 = arith.truncf %12 : vector<64x128xf32> to vector<64x128xbf16>
    %c0_7 = arith.constant 0 : index
    %c0_8 = arith.constant 0 : index
    %14 = vector.load %arg11[%c0_7, %c0_8] : memref<128x8xbf16, #tpu.memory_space<vmem>>, vector<128x8xbf16>
    %cst_9 = arith.constant dense<0.000000e+00> : vector<128x128xf32>
    %15 = tpu.matmul %14, %11, %cst_9 {dimension_numbers = #tpu.dot_dimension_numbers<[1], [0], [0], [1], [0, 0, 1, 1], [], []>} : vector<128x8xbf16>, vector<8x128xbf16>, vector<128x128xf32> -> vector<128x128xf32>
    %c0_10 = arith.constant 0 : index
    %c0_11 = arith.constant 0 : index
    %16 = vector.load %arg12[%c0_10, %c0_11] : memref<128x1xf32, #tpu.memory_space<vmem>>, vector<128x1xf32>
    %cst_12 = arith.constant dense<0xFF800000> : vector<128xf32>
    %17 = vector.multi_reduction <maximumf>, %15, %cst_12 [1] : vector<128x128xf32> to vector<128xf32>
    %18 = vector.shape_cast %17 : vector<128xf32> to vector<128x1xf32>
    %19 = arith.maximumf %16, %18 : vector<128x1xf32>
    %20 = arith.subf %16, %19 : vector<128x1xf32>
    %21 = math.exp %20 : vector<128x1xf32>
    %22 = vector.broadcast %19 : vector<128x1xf32> to vector<128x128xf32>
    %23 = arith.subf %15, %22 : vector<128x128xf32>
    %24 = math.exp %23 : vector<128x128xf32>
    %c0_13 = arith.constant 0 : index
    %c0_14 = arith.constant 0 : index
    %25 = vector.load %arg13[%c0_13, %c0_14] : memref<128x1xf32, #tpu.memory_space<vmem>>, vector<128x1xf32>
    %26 = arith.mulf %21, %25 : vector<128x1xf32>
    %cst_15 = arith.constant dense<0.000000e+00> : vector<128xf32>
    %27 = vector.multi_reduction <add>, %24, %cst_15 [1] : vector<128x128xf32> to vector<128xf32>
    %28 = vector.shape_cast %27 : vector<128xf32> to vector<128x1xf32>
    %29 = arith.addf %26, %28 : vector<128x1xf32>
    %c0_16 = arith.constant 0 : index
    %c0_17 = arith.constant 0 : index
    %30 = vector.load %arg13[%c0_16, %c0_17] : memref<128x1xf32, #tpu.memory_space<vmem>>, vector<128x1xf32>
    tpu.vector_store %arg13[%c0_16, %c0_17], %29 {strides = array<i32>} : memref<128x1xf32, #tpu.memory_space<vmem>>, vector<128x1xf32>,
    %c0_18 = arith.constant 0 : index
    %c0_19 = arith.constant 0 : index
    %31 = vector.load %arg14[%c0_18, %c0_19] : memref<128x64xf32, #tpu.memory_space<vmem>>, vector<128x64xf32>
    %32 = vector.broadcast %21 : vector<128x1xf32> to vector<128x64xf32>
    %33 = arith.mulf %32, %31 : vector<128x64xf32>
    %34 = arith.truncf %24 : vector<128x128xf32> to vector<128x128xbf16>
    %cst_20 = arith.constant dense<0.000000e+00> : vector<128x64xf32>
    %35 = tpu.matmul %34, %13, %cst_20 {dimension_numbers = #tpu.dot_dimension_numbers<[1], [1], [0], [0], [0, 0, 1, 0], [], []>} : vector<128x128xbf16>, vector<64x128xbf16>, vector<128x64xf32> -> vector<128x64xf32>
    %36 = arith.addf %33, %35 : vector<128x64xf32>
    %c0_21 = arith.constant 0 : index
    %c0_22 = arith.constant 0 : index
    %37 = vector.load %arg14[%c0_21, %c0_22] : memref<128x64xf32, #tpu.memory_space<vmem>>, vector<128x64xf32>
    tpu.vector_store %arg14[%c0_21, %c0_22], %36 {strides = array<i32>} : memref<128x64xf32, #tpu.memory_space<vmem>>, vector<128x64xf32>,
    %c0_23 = arith.constant 0 : index
    %c0_24 = arith.constant 0 : index
    %38 = vector.load %arg12[%c0_23, %c0_24] : memref<128x1xf32, #tpu.memory_space<vmem>>, vector<128x1xf32>
    tpu.vector_store %arg12[%c0_23, %c0_24], %19 {strides = array<i32>} : memref<128x1xf32, #tpu.memory_space<vmem>>, vector<128x1xf32>,
    %c1_i32 = arith.constant 1 : i32
    %39 = arith.cmpi eq, %arg2, %c1_i32 : i32
    %40 = arith.extui %39 : i1 to i32
    %c0_i32_25 = arith.constant 0 : i32
    %41 = arith.cmpi ne, %40, %c0_i32_25 : i32
    scf.if %41 {
      %c0_26 = arith.constant 0 : index
      %c0_27 = arith.constant 0 : index
      %42 = vector.load %arg14[%c0_26, %c0_27] : memref<128x64xf32, #tpu.memory_space<vmem>>, vector<128x64xf32>
      %c0_28 = arith.constant 0 : index
      %c0_29 = arith.constant 0 : index
      %43 = vector.load %arg13[%c0_28, %c0_29] : memref<128x1xf32, #tpu.memory_space<vmem>>, vector<128x1xf32>
      %44 = tpu.reciprocal %43 {approx = true} : vector<128x1xf32> -> vector<128x1xf32>
      %45 = vector.broadcast %44 : vector<128x1xf32> to vector<128x64xf32>
      %46 = arith.mulf %42, %45 : vector<128x64xf32>
      %c0_30 = arith.constant 0 : index
      %47 = memref.load %arg3[%c0_30] : memref<1xf32, #tpu.memory_space<smem>>
      %48 = tpu.transpose %46, [1, 0] : vector<128x64xf32> -> vector<64x128xf32>
      %49 = vector.broadcast %47 : f32 to vector<64x128xf32>
      %50 = arith.mulf %49, %48 : vector<64x128xf32>
      %c0_31 = arith.constant 0 : index
      %c0_32 = arith.constant 0 : index
      %c0_33 = arith.constant 0 : index
      %51 = vector.load %arg4[%c0_31, %c0_32, %c0_33] : memref<1x64x128xf32, #tpu.memory_space<vmem>>, vector<1x64x128xf32>
      %52 = vector.shape_cast %51 : vector<1x64x128xf32> to vector<64x128xf32>
      %53 = arith.addf %50, %52 : vector<64x128xf32>
      %c0_34 = arith.constant 0 : index
      %c0_35 = arith.constant 0 : index
      %c0_36 = arith.constant 0 : index
      %54 = vector.load %arg10[%c0_34, %c0_35, %c0_36] : memref<1x64x128xf32, #tpu.memory_space<vmem>>, vector<1x64x128xf32>
      %55 = vector.shape_cast %54 : vector<1x64x128xf32> to vector<64x128xf32>
      %56 = vector.shape_cast %53 : vector<64x128xf32> to vector<1x64x128xf32>
      tpu.vector_store %arg10[%c0_34, %c0_35, %c0_36], %56 {strides = array<i32>} : memref<1x64x128xf32, #tpu.memory_space<vmem>>, vector<1x64x128xf32>,
    } else {
    }
    return
  }
  func.func @transform_0(%arg0: i32, %arg1: i32, %arg2: i32) -> i32 {
    %c0_i32 = arith.constant 0 : i32
    %c0_i32_0 = arith.constant 0 : i32
    return %c0_i32 : i32
  }
  func.func @transform_1(%arg0: i32, %arg1: i32, %arg2: i32) -> (i32, i32, i32) {
    %c0_i32 = arith.constant 0 : i32
    %c0_i32_0 = arith.constant 0 : i32
    return %arg0, %c0_i32, %arg1 : i32, i32, i32
  }
  func.func @transform_2(%arg0: i32, %arg1: i32, %arg2: i32) -> (i32, i32, i32) {
    %c0_i32 = arith.constant 0 : i32
    %c0_i32_0 = arith.constant 0 : i32
    return %arg0, %c0_i32, %arg2 : i32, i32, i32
  }
  func.func @transform_3(%arg0: i32, %arg1: i32, %arg2: i32) -> (i32, i32) {
    %c0_i32 = arith.constant 0 : i32
    %c0_i32_0 = arith.constant 0 : i32
    %c0_i32_1 = arith.constant 0 : i32
    return %c0_i32, %c0_i32_0 : i32, i32
  }
  func.func @transform_4(%arg0: i32, %arg1: i32, %arg2: i32) -> (i32, i32) {
    %c0_i32 = arith.constant 0 : i32
    %c0_i32_0 = arith.constant 0 : i32
    %c0_i32_1 = arith.constant 0 : i32
    return %c0_i32, %c0_i32_0 : i32, i32
  }
  func.func @transform_5(%arg0: i32, %arg1: i32, %arg2: i32) -> (i32, i32) {
    %c0_i32 = arith.constant 0 : i32
    %c0_i32_0 = arith.constant 0 : i32
    %c0_i32_1 = arith.constant 0 : i32
    return %c0_i32, %c0_i32_0 : i32, i32
  }
  func.func @transform_6(%arg0: i32, %arg1: i32, %arg2: i32) -> (i32, i32) {
    %c0_i32 = arith.constant 0 : i32
    %c0_i32_0 = arith.constant 0 : i32
    %c0_i32_1 = arith.constant 0 : i32
    return %c0_i32, %c0_i32_0 : i32, i32
  }
  func.func @transform_7(%arg0: i32, %arg1: i32, %arg2: i32) -> (i32, i32, i32) {
    %c0_i32 = arith.constant 0 : i32
    %c0_i32_0 = arith.constant 0 : i32
    return %arg0, %c0_i32, %arg1 : i32, i32, i32
  }
}

</mosaic_0001>

<llo_original>
// kernel: tpu_custom_call.1
$region0: #{tpu_custom_call.1}
  #allocation0 [shape = 'u32[]', space=smem, size = 0x4, offset = 0x4, fixed_abs, tag = 'smem constant byte address 0x4 - core index']
  #allocation1 [shape = 'u32[72,128]{1,0:T(1,128)}', space=vmem, size = 0x9000, scoped, tag = 'internal scratch']
  #allocation2 [shape = 'bf16[128,8]{1,0:T(8,128)(2,1)}', space=vmem, size = 0x8000, scoped, tag = 'scratch operand']
  #allocation3 [shape = 'f32[128,1]{1,0:T(8,128)}', space=vmem, size = 0x10000, scoped, tag = 'scratch operand']
  #allocation4 [shape = 'f32[128,1]{1,0:T(8,128)}', space=vmem, size = 0x10000, scoped, tag = 'scratch operand']
  #allocation5 [shape = 'f32[128,64]{1,0:T(8,128)}', space=vmem, size = 0x10000, scoped, tag = 'scratch operand']
  #allocation6 [shape = 'f32[1]{0:T(128)S(6)}', space=smem, size = 0x200, scoped, tag = 'scoped memory for tpu_custom_call.1']
  %s0 = inlined_call_operand.<no memory space> [shape: f32[1], index: 0, kind: input, shape index: {}]
  %s1 = inlined_call_operand.hbm [shape: f32[2,64,256], index: 1, kind: input, shape index: {}]
  %s2 = inlined_call_operand.vmem [shape: bf16[2,64,256], index: 2, kind: input, shape index: {}]
  %s3 = inlined_call_operand.vmem [shape: bf16[8,64], index: 3, kind: input, shape index: {}]
  %s4 = inlined_call_operand.vmem [shape: f32[8,1], index: 4, kind: input, shape index: {}]
  %s5 = inlined_call_operand.vmem [shape: bf16[72,64], index: 5, kind: input, shape index: {}]
  %s6 = inlined_call_operand.vmem [shape: f32[72,1], index: 6, kind: input, shape index: {}]
  %s7 = inlined_call_operand.hbm [shape: f32[2,64,256], index: 7, kind: output, shape index: {}]
  %s8 = sld [smem:[#allocation0]]
  $region114: #{tpu_custom_call.1} parent=0
    _
  %s10 = ssub.s32 1, %s8
  %s11 = scalar_select 0, %s10, %s8
  %12 = sst [smem:[#allocation6]] %s0
  $region1: #{tpu_custom_call.1} parent=0
    #allocation7 [shape = 'u8[65536]{0}', space=vmem, size = 0x10000, scoped, tag = 'input window, operand 1']
    #allocation8 [shape = 's32[2]{0}', space=sflag, size = 0x8, scoped, tag = 'scoped memory for tpu_custom_call.1']
    #allocation9 [shape = 's32[2]{0}', space=sflag, size = 0x8, scoped, tag = 'scoped memory for tpu_custom_call.1']
    #allocation10 [shape = 'u8[32768]{0}', space=vmem, size = 0x8000, scoped, tag = 'input window, operand 2']
    #allocation11 [shape = 'u8[65536]{0}', space=vmem, size = 0x10000, scoped, tag = 'output window, operand 0']
    %13 = vsyncpa [#allocation8], 0
    %s14 = scalar_lea.sflag [#allocation8], 1
    %15 = vsyncpa %s14, 0
    %16 = vsyncpa [#allocation9], 0
    %s17 = scalar_lea.sflag [#allocation9], 1
    %18 = vsyncpa %s17, 0
    loop: start=0, step=1, limit=10
    $region2: #{tpu_custom_call.1} parent=1 // loop_pre_header
      _
    $region3: #{tpu_custom_call.1} parent=1 // loop_header
      %s20 = sphi 0, %s24
      %p21 = scmp.ge.s32.totalorder %s20, 10
      %s27 = sphi 0, %s46
      %s28 = sphi 0, %s42
      %s29 = sphi 0, %s38
      %s30 = sphi 0, %s27
      %s31 = sphi 0, %s28
      %s32 = sphi 0, %s29
      %s33 = sphi 0, %s30
      %s34 = sphi 0, %s31
      %s35 = sphi 0, %s32
      %s47 = sphi 0, %s47
      %s49 = sphi 0, %s47
      %s50 = sphi 0, %s49
      %s64 = sphi 0, %s50
      %s72 = sphi 0, %s74
      %s75 = sphi 0, %s72
      %s76 = sphi 0, %s75
      %s92 = sphi 0, %s76
      %s100 = sphi 0, %s102
      %s103 = sphi 0, %s100
      %s104 = sphi 0, %s103
      %s120 = sphi 0, %s104
      %s124 = sphi 0, %s124
      %s126 = sphi 0, %s124
      %s127 = sphi 0, %s126
      %s141 = sphi 0, %s127
      %s145 = sphi 0, %s145
      %s147 = sphi 0, %s145
      %s148 = sphi 0, %s147
      %s162 = sphi 0, %s148
      %s166 = sphi 0, %s166
      %s168 = sphi 0, %s166
      %s169 = sphi 0, %s168
      %s183 = sphi 0, %s169
      %s187 = sphi 0, %s187
      %s189 = sphi 0, %s187
      %s190 = sphi 0, %s189
      %s204 = sphi 0, %s190
      %s212 = sphi 0, %s214
      %s215 = sphi 0, %s212
      %s216 = sphi 0, %s215
      %s232 = sphi 0, %s216
    $region4: #{tpu_custom_call.1} parent=1 // loop_header_branch
      %23 = sbr.rel (%p21) target = $region8
    $region5: #{tpu_custom_call.1} parent=1 // loop_body
      %s25 = ssub.s32 %s20, 1
      %s26 = ssub.s32 %s20, 2
      %s36 = sadd.s32 1, %s29
      %p37 = scmp.ge.s32.totalorder %s36, 2
      %s38 = scalar_select %p37, 0, %s36
      %s39 = sadd.s32 1, %s28
      %s40 = scalar_select %p37, %s39, %s28
      %p41 = scmp.ge.s32.totalorder %s40, 2
      %s42 = scalar_select %p41, 0, %s40
      %s43 = sadd.s32 1, %s27
      %s44 = scalar_select %p41, %s43, %s27
      %p45 = scmp.ge.s32.totalorder %s44, 2
      %s46 = scalar_select %p45, 0, %s44
      %s48 = sadd.s32 %s47, 1
      %p51 = scmp.eq.s32.totalorder %s20, 7
      %p52 = scmp.ne.s32.totalorder %s47, %s49
      %p53 = scmp.eq.s32.totalorder %s20, 0
      %p54 = por %p52, %p53
      %p55 = scmp.ne.s32.totalorder %s47, %s49
      %p56 = scmp.eq.s32.totalorder %s25, 7
      %p57 = por %p55, %p56
      %p58 = scmp.ne.s32.totalorder %s49, %s50
      %p59 = scmp.eq.s32.totalorder %s25, 0
      %p60 = por %p58, %p59
      %p61 = scmp.ne.s32.totalorder %s49, %s50
      %p62 = scmp.eq.s32.totalorder %s26, 7
      %p63 = por %p61, %p62
      %p65 = scmp.ne.s32.totalorder %s50, %s64
      %p66 = scmp.eq.s32.totalorder %s26, 0
      %p67 = por %p65, %p66
      %s68 = ssub.s32 %s27, %s46
      %s69 = ssub.s32 %s28, %s42
      %s70 = sor.u32 %s68, %s69
      %p71 = scmp.eq.s32.totalorder %s70, 0
      %s73 = sadd.s32 %s72, 1
      %s74 = scalar_select %p71, %s72, %s73
      %p77 = pneg %p71
      %p78 = scmp.eq.s32.totalorder %s20, 7
      %p79 = por %p77, %p78
      %p80 = scmp.ne.s32.totalorder %s72, %s75
      %p81 = scmp.eq.s32.totalorder %s20, 0
      %p82 = por %p80, %p81
      %p83 = scmp.ne.s32.totalorder %s72, %s75
      %p84 = scmp.eq.s32.totalorder %s25, 7
      %p85 = por %p83, %p84
      %p86 = scmp.ne.s32.totalorder %s75, %s76
      %p87 = scmp.eq.s32.totalorder %s25, 0
      %p88 = por %p86, %p87
      %p89 = scmp.ne.s32.totalorder %s75, %s76
      %p90 = scmp.eq.s32.totalorder %s26, 7
      %p91 = por %p89, %p90
      %p93 = scmp.ne.s32.totalorder %s76, %s92
      %p94 = scmp.eq.s32.totalorder %s26, 0
      %p95 = por %p93, %p94
      %s96 = ssub.s32 %s27, %s46
      %s97 = ssub.s32 %s29, %s38
      %s98 = sor.u32 %s96, %s97
      %p99 = scmp.eq.s32.totalorder %s98, 0
      %s101 = sadd.s32 %s100, 1
      %s102 = scalar_select %p99, %s100, %s101
      %p105 = pneg %p99
      %p106 = scmp.eq.s32.totalorder %s20, 7
      %p107 = por %p105, %p106
      %p108 = scmp.ne.s32.totalorder %s100, %s103
      %p109 = scmp.eq.s32.totalorder %s20, 0
      %p110 = por %p108, %p109
      %p111 = scmp.ne.s32.totalorder %s100, %s103
      %p112 = scmp.eq.s32.totalorder %s25, 7
      %p113 = por %p111, %p112
      %p114 = scmp.ne.s32.totalorder %s103, %s104
      %p115 = scmp.eq.s32.totalorder %s25, 0
      %p116 = por %p114, %p115
      %p117 = scmp.ne.s32.totalorder %s103, %s104
      %p118 = scmp.eq.s32.totalorder %s26, 7
      %p119 = por %p117, %p118
      %p121 = scmp.ne.s32.totalorder %s104, %s120
      %p122 = scmp.eq.s32.totalorder %s26, 0
      %p123 = por %p121, %p122
      %s125 = sadd.s32 %s124, 1
      %p128 = scmp.eq.s32.totalorder %s20, 7
      %p129 = scmp.ne.s32.totalorder %s124, %s126
      %p130 = scmp.eq.s32.totalorder %s20, 0
      %p131 = por %p129, %p130
      %p132 = scmp.ne.s32.totalorder %s124, %s126
      %p133 = scmp.eq.s32.totalorder %s25, 7
      %p134 = por %p132, %p133
      %p135 = scmp.ne.s32.totalorder %s126, %s127
      %p136 = scmp.eq.s32.totalorder %s25, 0
      %p137 = por %p135, %p136
      %p138 = scmp.ne.s32.totalorder %s126, %s127
      %p139 = scmp.eq.s32.totalorder %s26, 7
      %p140 = por %p138, %p139
      %p142 = scmp.ne.s32.totalorder %s127, %s141
      %p143 = scmp.eq.s32.totalorder %s26, 0
      %p144 = por %p142, %p143
      %s146 = sadd.s32 %s145, 1
      %p149 = scmp.eq.s32.totalorder %s20, 7
      %p150 = scmp.ne.s32.totalorder %s145, %s147
      %p151 = scmp.eq.s32.totalorder %s20, 0
      %p152 = por %p150, %p151
      %p153 = scmp.ne.s32.totalorder %s145, %s147
      %p154 = scmp.eq.s32.totalorder %s25, 7
      %p155 = por %p153, %p154
      %p156 = scmp.ne.s32.totalorder %s147, %s148
      %p157 = scmp.eq.s32.totalorder %s25, 0
      %p158 = por %p156, %p157
      %p159 = scmp.ne.s32.totalorder %s147, %s148
      %p160 = scmp.eq.s32.totalorder %s26, 7
      %p161 = por %p159, %p160
      %p163 = scmp.ne.s32.totalorder %s148, %s162
      %p164 = scmp.eq.s32.totalorder %s26, 0
      %p165 = por %p163, %p164
      %s167 = sadd.s32 %s166, 1
      %p170 = scmp.eq.s32.totalorder %s20, 7
      %p171 = scmp.ne.s32.totalorder %s166, %s168
      %p172 = scmp.eq.s32.totalorder %s20, 0
      %p173 = por %p171, %p172
      %p174 = scmp.ne.s32.totalorder %s166, %s168
      %p175 = scmp.eq.s32.totalorder %s25, 7
      %p176 = por %p174, %p175
      %p177 = scmp.ne.s32.totalorder %s168, %s169
      %p178 = scmp.eq.s32.totalorder %s25, 0
      %p179 = por %p177, %p178
      %p180 = scmp.ne.s32.totalorder %s168, %s169
      %p181 = scmp.eq.s32.totalorder %s26, 7
      %p182 = por %p180, %p181
      %p184 = scmp.ne.s32.totalorder %s169, %s183
      %p185 = scmp.eq.s32.totalorder %s26, 0
      %p186 = por %p184, %p185
      %s188 = sadd.s32 %s187, 1
      %p191 = scmp.eq.s32.totalorder %s20, 7
      %p192 = scmp.ne.s32.totalorder %s187, %s189
      %p193 = scmp.eq.s32.totalorder %s20, 0
      %p194 = por %p192, %p193
      %p195 = scmp.ne.s32.totalorder %s187, %s189
      %p196 = scmp.eq.s32.totalorder %s25, 7
      %p197 = por %p195, %p196
      %p198 = scmp.ne.s32.totalorder %s189, %s190
      %p199 = scmp.eq.s32.totalorder %s25, 0
      %p200 = por %p198, %p199
      %p201 = scmp.ne.s32.totalorder %s189, %s190
      %p202 = scmp.eq.s32.totalorder %s26, 7
      %p203 = por %p201, %p202
      %p205 = scmp.ne.s32.totalorder %s190, %s204
      %p206 = scmp.eq.s32.totalorder %s26, 0
      %p207 = por %p205, %p206
      %s208 = ssub.s32 %s27, %s46
      %s209 = ssub.s32 %s28, %s42
      %s210 = sor.u32 %s208, %s209
      %p211 = scmp.eq.s32.totalorder %s210, 0
      %s213 = sadd.s32 %s212, 1
      %s214 = scalar_select %p211, %s212, %s213
      %p217 = pneg %p211
      %p218 = scmp.eq.s32.totalorder %s20, 7
      %p219 = por %p217, %p218
      %p220 = scmp.ne.s32.totalorder %s212, %s215
      %p221 = scmp.eq.s32.totalorder %s20, 0
      %p222 = por %p220, %p221
      %p223 = scmp.ne.s32.totalorder %s212, %s215
      %p224 = scmp.eq.s32.totalorder %s25, 7
      %p225 = por %p223, %p224
      %p226 = scmp.ne.s32.totalorder %s215, %s216
      %p227 = scmp.eq.s32.totalorder %s25, 0
      %p228 = por %p226, %p227
      %p229 = scmp.ne.s32.totalorder %s215, %s216
      %p230 = scmp.eq.s32.totalorder %s26, 7
      %p231 = por %p229, %p230
      %p233 = scmp.ne.s32.totalorder %s216, %s232
      %p234 = scmp.eq.s32.totalorder %s26, 0
      %p235 = por %p233, %p234
      %p236 = scmp.le.s32.totalorder 1, %s20
      %p237 = scmp.lt.s32.totalorder %s20, 9
      %p238 = pnand %p236, %p237
      %p239 = pneg %p238
      // Predicated region
      $region9: #{tpu_custom_call.1} parent=5 // pred_check
        _
      $region10: #{tpu_custom_call.1} parent=5 // pred_check_branch
        %241 = sbr.rel (%p238) target = $region12
      $region11: #{tpu_custom_call.1} parent=5 // pred_region
        %s242 = ssub.s32 %s20, 1
        // Predicated region
        $region13: #{tpu_custom_call.1} parent=11 // pred_check
          %p243 = pneg %p60
        $region14: #{tpu_custom_call.1} parent=11 // pred_check_branch
          %245 = sbr.rel (%p243) target = $region16
        $region15: #{tpu_custom_call.1} parent=11 // pred_region
          _
        $region16: #{tpu_custom_call.1} parent=11 // pred_fallthru
          _
        // Predicated region
        $region17: #{tpu_custom_call.1} parent=11 // pred_check
          %p246 = pneg %p137
        $region18: #{tpu_custom_call.1} parent=11 // pred_check_branch
          %248 = sbr.rel (%p246) target = $region20
        $region19: #{tpu_custom_call.1} parent=11 // pred_region
          _
        $region20: #{tpu_custom_call.1} parent=11 // pred_fallthru
          _
        // Predicated region
        $region21: #{tpu_custom_call.1} parent=11 // pred_check
          %p249 = pneg %p158
        $region22: #{tpu_custom_call.1} parent=11 // pred_check_branch
          %251 = sbr.rel (%p249) target = $region24
        $region23: #{tpu_custom_call.1} parent=11 // pred_region
          _
        $region24: #{tpu_custom_call.1} parent=11 // pred_fallthru
          _
        // Predicated region
        $region25: #{tpu_custom_call.1} parent=11 // pred_check
          %p252 = pneg %p179
        $region26: #{tpu_custom_call.1} parent=11 // pred_check_branch
          %254 = sbr.rel (%p252) target = $region28
        $region27: #{tpu_custom_call.1} parent=11 // pred_region
          _
        $region28: #{tpu_custom_call.1} parent=11 // pred_fallthru
          _
        // Predicated region
        $region29: #{tpu_custom_call.1} parent=11 // pred_check
          %p255 = pneg %p200
        $region30: #{tpu_custom_call.1} parent=11 // pred_check_branch
          %257 = sbr.rel (%p255) target = $region32
        $region31: #{tpu_custom_call.1} parent=11 // pred_region
          _
        $region32: #{tpu_custom_call.1} parent=11 // pred_fallthru
          _
      $region12: #{tpu_custom_call.1} parent=5 // pred_fallthru
        _
      %p258 = scmp.lt.s32.totalorder %s20, 8
      // Predicated region
      $region33: #{tpu_custom_call.1} parent=5 // pred_check
        %p259 = pneg %p258
      $region34: #{tpu_custom_call.1} parent=5 // pred_check_branch
        %261 = sbr.rel (%p259) target = $region36
      $region35: #{tpu_custom_call.1} parent=5 // pred_region
        // Predicated region
        $region37: #{tpu_custom_call.1} parent=35 // pred_check
          %p262 = pneg %p82
        $region38: #{tpu_custom_call.1} parent=35 // pred_check_branch
          %264 = sbr.rel (%p262) target = $region40
        $region39: #{tpu_custom_call.1} parent=35 // pred_region
          %s265 = sand.u32 %s72, 1
          %s266 = scalar_lea.sflag [#allocation8], %s265
          %s267 = sand.u32 %s72, 1
          %s268 = smul.addr %s267, 64
          %s269 = scalar_lea.vmem [#allocation7], %s268
          %271 = vsyncadd %s266, 0
          %s272 = smul.addr %s27, 16
          %s273 = sadd.s32 %s28, %s272
          %s274 = smul.addr %s273, 8
          %s275 = scalar_lea.hbm %s1, %s274
          %s276 = sshll.u32 %s275, 4
          %s277 = int_to_ptr.hbm [resolvable:$true] %s276
          %s278 = sshll.u32 %s269, 4
          %s279 = int_to_ptr.vmem [resolvable:$true] %s278
          %284 = dma.hbm_to_vmem [thread:$0]  %s277, 1024, %s279, %s266, 256, 128, 8
        $region40: #{tpu_custom_call.1} parent=35 // pred_fallthru
          _
        // Predicated region
        $region41: #{tpu_custom_call.1} parent=35 // pred_check
          %p285 = pneg %p110
        $region42: #{tpu_custom_call.1} parent=35 // pred_check_branch
          %287 = sbr.rel (%p285) target = $region44
        $region43: #{tpu_custom_call.1} parent=35 // pred_region
          %s288 = sand.u32 %s100, 1
          %s289 = sand.u32 %s100, 1
          %s290 = smul.addr %s289, 32
          %s291 = scalar_lea.vmem [#allocation10], %s290
          %s292 = smul.addr %s27, 16
          %s293 = sadd.s32 %s29, %s292
          %s294 = smul.addr %s293, 4
          %s295 = scalar_lea.vmem %s2, %s294
          // Predicated region
          $region45: #{tpu_custom_call.1} parent=43 // pred_check
            _
          $region46: #{tpu_custom_call.1} parent=43 // pred_check_branch
            %297 = sbr.rel (0) target = $region48
          $region47: #{tpu_custom_call.1} parent=43 // pred_region
            // Predicated region
            $region49: #{tpu_custom_call.1} parent=47 // pred_check
              _
            $region50: #{tpu_custom_call.1} parent=47 // pred_check_branch
              %299 = sbr.rel target = $region52
            $region51: #{tpu_custom_call.1} parent=47 // pred_region
              // Predicated region
              $region64: #{tpu_custom_call.1} parent=51 // pred_check
                _
              $region65: #{tpu_custom_call.1} parent=51 // pred_check_branch
                %329 = sbr.rel (0) target = $region67
              $region66: #{tpu_custom_call.1} parent=51 // pred_region
                loop: start=0, step=1, limit=1
                $region68: #{tpu_custom_call.1} parent=66 // loop_pre_header
                  _
                $region69: #{tpu_custom_call.1} parent=66 // loop_header
                  %s331 = sphi 0, %s335
                  %p332 = scmp.ge.s32.totalorder %s331, 1
                  %s336 = sphi %s295, %s295
                  %s337 = sphi %s291, %s291
                $region70: #{tpu_custom_call.1} parent=66 // loop_header_branch
                  %334 = sbr.rel (%p332) target = $region74
                $region71: #{tpu_custom_call.1} parent=66 // loop_body
                  _
                $region72: #{tpu_custom_call.1} parent=66 // loop_footer
                  %s335 = sadd.s32 1, %s331
                $region73: #{tpu_custom_call.1} parent=66 // loop_footer_branch
                  %330 = sbr.rel target = $region69
                $region74: #{tpu_custom_call.1} parent=66 // loop_exit
                  _
                %s339 = ssub.s32 16, 1
                loop: start=0, step=1, limit=1
                $region75: #{tpu_custom_call.1} parent=66 // loop_pre_header
                  _
                $region76: #{tpu_custom_call.1} parent=66 // loop_header
                  %s341 = sphi 0, %s345
                  %p342 = scmp.ge.s32.totalorder %s341, 1
                  %s346 = sphi %s295, %s295
                  %s347 = sphi %s291, %s291
                $region77: #{tpu_custom_call.1} parent=66 // loop_header_branch
                  %344 = sbr.rel (%p342) target = $region81
                $region78: #{tpu_custom_call.1} parent=66 // loop_body
                  %v348 = vld [vmem:[%s346] sm:%s339]
                  %349 = vst [vmem:[%s347] sm:%s339] %v348
                  %v350 = vld [vmem:[%s346 + $0x8] sm:%s339]
                  %351 = vst [vmem:[%s347 + $0x4] sm:%s339] %v350
                  %v352 = vld [vmem:[%s346 + $0x10] sm:%s339]
                  %353 = vst [vmem:[%s347 + $0x8] sm:%s339] %v352
                  %v354 = vld [vmem:[%s346 + $0x18] sm:%s339]
                  %355 = vst [vmem:[%s347 + $0xc] sm:%s339] %v354
                  %v356 = vld [vmem:[%s346 + $0x20] sm:%s339]
                  %357 = vst [vmem:[%s347 + $0x10] sm:%s339] %v356
                  %v358 = vld [vmem:[%s346 + $0x28] sm:%s339]
                  %359 = vst [vmem:[%s347 + $0x14] sm:%s339] %v358
                  %v360 = vld [vmem:[%s346 + $0x30] sm:%s339]
                  %361 = vst [vmem:[%s347 + $0x18] sm:%s339] %v360
                  %v362 = vld [vmem:[%s346 + $0x38] sm:%s339]
                  %363 = vst [vmem:[%s347 + $0x1c] sm:%s339] %v362
                $region79: #{tpu_custom_call.1} parent=66 // loop_footer
                  %s345 = sadd.s32 1, %s341
                $region80: #{tpu_custom_call.1} parent=66 // loop_footer_branch
                  %340 = sbr.rel target = $region76
                $region81: #{tpu_custom_call.1} parent=66 // loop_exit
                  _
              $region67: #{tpu_custom_call.1} parent=51 // pred_fallthru
                _
            $region52: #{tpu_custom_call.1} parent=47 // pred_fallthru
              _
            // Predicated region
            $region53: #{tpu_custom_call.1} parent=47 // pred_check
              _
            $region54: #{tpu_custom_call.1} parent=47 // pred_check_branch
              %301 = sbr.rel (0) target = $region56
            $region55: #{tpu_custom_call.1} parent=47 // pred_region
              %s303 = ssub.s32 16, 1
              loop: start=0, step=1, limit=1
              $region57: #{tpu_custom_call.1} parent=55 // loop_pre_header
                _
              $region58: #{tpu_custom_call.1} parent=55 // loop_header
                %s305 = sphi 0, %s309
                %p306 = scmp.ge.s32.totalorder %s305, 1
                %s310 = sphi %s295, %s295
                %s311 = sphi %s291, %s291
              $region59: #{tpu_custom_call.1} parent=55 // loop_header_branch
                %308 = sbr.rel (%p306) target = $region63
              $region60: #{tpu_custom_call.1} parent=55 // loop_body
                %v312 = vld [vmem:[%s310] sm:%s303]
                %313 = vst [vmem:[%s311] sm:%s303] %v312
                %v314 = vld [vmem:[%s310 + $0x8] sm:%s303]
                %315 = vst [vmem:[%s311 + $0x4] sm:%s303] %v314
                %v316 = vld [vmem:[%s310 + $0x10] sm:%s303]
                %317 = vst [vmem:[%s311 + $0x8] sm:%s303] %v316
                %v318 = vld [vmem:[%s310 + $0x18] sm:%s303]
                %319 = vst [vmem:[%s311 + $0xc] sm:%s303] %v318
                %v320 = vld [vmem:[%s310 + $0x20] sm:%s303]
                %321 = vst [vmem:[%s311 + $0x10] sm:%s303] %v320
                %v322 = vld [vmem:[%s310 + $0x28] sm:%s303]
                %323 = vst [vmem:[%s311 + $0x14] sm:%s303] %v322
                %v324 = vld [vmem:[%s310 + $0x30] sm:%s303]
                %325 = vst [vmem:[%s311 + $0x18] sm:%s303] %v324
                %v326 = vld [vmem:[%s310 + $0x38] sm:%s303]
                %327 = vst [vmem:[%s311 + $0x1c] sm:%s303] %v326
              $region61: #{tpu_custom_call.1} parent=55 // loop_footer
                %s309 = sadd.s32 1, %s305
              $region62: #{tpu_custom_call.1} parent=55 // loop_footer_branch
                %304 = sbr.rel target = $region58
              $region63: #{tpu_custom_call.1} parent=55 // loop_exit
                _
            $region56: #{tpu_custom_call.1} parent=47 // pred_fallthru
              _
          $region48: #{tpu_custom_call.1} parent=43 // pred_fallthru
            _
          %364 = vnop
        $region44: #{tpu_custom_call.1} parent=35 // pred_fallthru
          _
      $region36: #{tpu_custom_call.1} parent=5 // pred_fallthru
        _
      %p365 = scmp.le.s32.totalorder 1, %s20
      %p366 = scmp.lt.s32.totalorder %s20, 9
      %p367 = pnand %p365, %p366
      %p368 = pneg %p367
      // Predicated region
      $region82: #{tpu_custom_call.1} parent=5 // pred_check
        _
      $region83: #{tpu_custom_call.1} parent=5 // pred_check_branch
        %370 = sbr.rel (%p367) target = $region85
      $region84: #{tpu_custom_call.1} parent=5 // pred_region
        %s371 = ssub.s32 %s20, 1
        %s372 = sand.u32 %s75, 1
        %s373 = scalar_lea.sflag [#allocation8], %s372
        %s374 = sand.u32 %s75, 1
        %s375 = smul.addr %s374, 64
        %s376 = scalar_lea.vmem [#allocation7], %s375
        // Predicated region
        $region86: #{tpu_custom_call.1} parent=84 // pred_check
          %p377 = pneg %p88
        $region87: #{tpu_custom_call.1} parent=84 // pred_check_branch
          %379 = sbr.rel (%p377) target = $region89
        $region88: #{tpu_custom_call.1} parent=84 // pred_region
          %381 = dma.done %s373, 1024
        $region89: #{tpu_custom_call.1} parent=84 // pred_fallthru
          _
        %s382 = sand.u32 %s103, 1
        %s383 = sand.u32 %s103, 1
        %s384 = smul.addr %s383, 32
        %s385 = scalar_lea.vmem [#allocation10], %s384
        // Predicated region
        $region90: #{tpu_custom_call.1} parent=84 // pred_check
          %p386 = pneg %p116
        $region91: #{tpu_custom_call.1} parent=84 // pred_check_branch
          %388 = sbr.rel (%p386) target = $region93
        $region92: #{tpu_custom_call.1} parent=84 // pred_region
          _
        $region93: #{tpu_custom_call.1} parent=84 // pred_fallthru
          _
        %p389 = pneg %p60
        %p390 = pneg %p57
        %s391 = sand.u32 %s75, 1
        %s392 = scalar_lea.sflag [#allocation8], %s391
        %s393 = sand.u32 %s75, 1
        %s394 = smul.addr %s393, 64
        %s395 = scalar_lea.vmem [#allocation7], %s394
        %p396 = pneg %p88
        %p397 = pneg %p85
        %s398 = sand.u32 %s103, 1
        %s399 = sand.u32 %s103, 1
        %s400 = smul.addr %s399, 32
        %s401 = scalar_lea.vmem [#allocation10], %s400
        %p402 = pneg %p116
        %p403 = pneg %p113
        %p404 = pneg %p137
        %p405 = pneg %p134
        %p406 = pneg %p158
        %p407 = pneg %p155
        %p408 = pneg %p179
        %p409 = pneg %p176
        %p410 = pneg %p200
        %p411 = pneg %p197
        %p412 = pneg %p228
        %p413 = pneg %p225
        %s414 = sand.u32 %s215, 1
        %s415 = scalar_lea.sflag [#allocation9], %s414
        %s416 = sand.u32 %s215, 1
        %s417 = smul.addr %s416, 64
        %s418 = scalar_lea.vmem [#allocation11], %s417
        %p420 = scmp.eq.s32.totalorder %s32, 0
        // Predicated region
        $region94: #{tpu_custom_call.1} parent=84 // pred_check
          %p421 = pneg %p420
        $region95: #{tpu_custom_call.1} parent=84 // pred_check_branch
          %423 = sbr.rel (%p421) target = $region97
        $region96: #{tpu_custom_call.1} parent=84 // pred_region
          %v424 = vld [vmem:[%s376] sm:$0xff]
          %v425 = vld [vmem:[%s376 + $0x8] sm:$0xff]
          %v426 = vld [vmem:[%s376 + $0x10] sm:$0xff]
          %v427 = vld [vmem:[%s376 + $0x18] sm:$0xff]
          %v428 = vld [vmem:[%s376 + $0x20] sm:$0xff]
          %v429 = vld [vmem:[%s376 + $0x28] sm:$0xff]
          %v430 = vld [vmem:[%s376 + $0x30] sm:$0xff]
          %v431 = vld [vmem:[%s376 + $0x38] sm:$0xff]
          %v432 = vpack.c.bf16 %v425, %v424
          %v433 = vpack.c.bf16 %v427, %v426
          %v434 = vpack.c.bf16 %v429, %v428
          %v435 = vpack.c.bf16 %v431, %v430
          %v436 = vld [vmem:[%s3] sm:$0xf]
          %v437 = vld [vmem:[%s4] sm:$0xff]
          %439 = vset.pattern.permute.xlu0 0
          %440 = vperm.xlu0 %439, %v437
          %v441 = vpop.permute.xlu0 %440
          %vm443 = vcmask 523264
          %v445 = vsel %vm443, %v436, 0
          %447 = vmatpush.bf16.msra.mxu0 0
          %448 = vmatpush.bf16.msra.mxu0 0
          %449 = vmatpush.bf16.msra.mxu0 0
          %450 = vmatpush.bf16.msra.mxu0 0
          %451 = vmatpush.bf16.msra.mxu0 %v435
          %452 = vmatpush.bf16.msra.mxu0 %v434
          %453 = vmatpush.bf16.msra.mxu0 %v433
          %454 = vmatpush.bf16.msra.mxu0 %v432
          %455 = vmatmul.bf16.gmra.mxu0 %v445
          %v456 = vpop.f32.mrf.mxu0
          %v457 = vadd.f32 %v441, %v456
          %v458 = vpop.f32.mrf.mxu0
          %459 = vdwg.mxu0
          %460 = vxpose.xlu0.b32.start [1/16] %v457, 128
          %461 = vxpose.xlu0.b32.cont [2/16] 0.0, 128
          %462 = vxpose.xlu0.b32.cont [3/16] 0.0, 128
          %463 = vxpose.xlu0.b32.cont [4/16] 0.0, 128
          %464 = vxpose.xlu0.b32.cont [5/16] 0.0, 128
          %465 = vxpose.xlu0.b32.cont [6/16] 0.0, 128
          %466 = vxpose.xlu0.b32.cont [7/16] 0.0, 128
          %467 = vxpose.xlu0.b32.cont [8/16] 0.0, 128
          %468 = vxpose.xlu0.b32.cont [9/16] 0.0, 128
          %469 = vxpose.xlu0.b32.cont [10/16] 0.0, 128
          %470 = vxpose.xlu0.b32.cont [11/16] 0.0, 128
          %471 = vxpose.xlu0.b32.cont [12/16] 0.0, 128
          %472 = vxpose.xlu0.b32.cont [13/16] 0.0, 128
          %473 = vxpose.xlu0.b32.cont [14/16] 0.0, 128
          %474 = vxpose.xlu0.b32.cont [15/16] 0.0, 128
          %475 = vxpose.xlu0.b32.end [16/16] 0.0, 128
          %v476 = vpop.trf.xlu0
          %v477 = vpop.trf.xlu0
          %v478 = vpop.trf.xlu0
          %v479 = vpop.trf.xlu0
          %v480 = vpop.trf.xlu0
          %v481 = vpop.trf.xlu0
          %v482 = vpop.trf.xlu0
          %v483 = vpop.trf.xlu0
          %v484 = vpop.trf.xlu0
          %v485 = vpop.trf.xlu0
          %v486 = vpop.trf.xlu0
          %v487 = vpop.trf.xlu0
          %v488 = vpop.trf.xlu0
          %v489 = vpop.trf.xlu0
          %v490 = vpop.trf.xlu0
          %v491 = vpop.trf.xlu0
          %v492 = vpack.c.bf16 %v476, %v476
          %v493 = vpack.c.bf16 %v477, %v477
          %v494 = vpack.c.bf16 %v478, %v478
          %v495 = vpack.c.bf16 %v479, %v479
          %v496 = vpack.c.bf16 %v480, %v480
          %v497 = vpack.c.bf16 %v481, %v481
          %v498 = vpack.c.bf16 %v482, %v482
          %v499 = vpack.c.bf16 %v483, %v483
          %v500 = vpack.c.bf16 %v484, %v484
          %v501 = vpack.c.bf16 %v485, %v485
          %v502 = vpack.c.bf16 %v486, %v486
          %v503 = vpack.c.bf16 %v487, %v487
          %v504 = vpack.c.bf16 %v488, %v488
          %v505 = vpack.c.bf16 %v489, %v489
          %v506 = vpack.c.bf16 %v490, %v490
          %v507 = vpack.c.bf16 %v491, %v491
          %vm508 = vcmask 60416
          %509 = vst.msk [vmem:[#allocation2] sm:$0xf] %vm508, %v492
          %510 = vst.msk [vmem:[#allocation2 + $0x4] sm:$0xf] %vm508, %v493
          %511 = vst.msk [vmem:[#allocation2 + $0x8] sm:$0xf] %vm508, %v494
          %512 = vst.msk [vmem:[#allocation2 + $0xc] sm:$0xf] %vm508, %v495
          %513 = vst.msk [vmem:[#allocation2 + $0x10] sm:$0xf] %vm508, %v496
          %514 = vst.msk [vmem:[#allocation2 + $0x14] sm:$0xf] %vm508, %v497
          %515 = vst.msk [vmem:[#allocation2 + $0x18] sm:$0xf] %vm508, %v498
          %516 = vst.msk [vmem:[#allocation2 + $0x1c] sm:$0xf] %vm508, %v499
          %517 = vst.msk [vmem:[#allocation2 + $0x20] sm:$0xf] %vm508, %v500
          %518 = vst.msk [vmem:[#allocation2 + $0x24] sm:$0xf] %vm508, %v501
          %519 = vst.msk [vmem:[#allocation2 + $0x28] sm:$0xf] %vm508, %v502
          %520 = vst.msk [vmem:[#allocation2 + $0x2c] sm:$0xf] %vm508, %v503
          %521 = vst.msk [vmem:[#allocation2 + $0x30] sm:$0xf] %vm508, %v504
          %522 = vst.msk [vmem:[#allocation2 + $0x34] sm:$0xf] %vm508, %v505
          %523 = vst.msk [vmem:[#allocation2 + $0x38] sm:$0xf] %vm508, %v506
          %524 = vst.msk [vmem:[#allocation2 + $0x3c] sm:$0xf] %vm508, %v507
          %vm525 = vcmask 7168
          %526 = vst.msk [vmem:[#allocation3] sm:$0xff] %vm525, -inf
          %527 = vst.msk [vmem:[#allocation3 + $0x8] sm:$0xff] %vm525, -inf
          %528 = vst.msk [vmem:[#allocation3 + $0x10] sm:$0xff] %vm525, -inf
          %529 = vst.msk [vmem:[#allocation3 + $0x18] sm:$0xff] %vm525, -inf
          %530 = vst.msk [vmem:[#allocation3 + $0x20] sm:$0xff] %vm525, -inf
          %531 = vst.msk [vmem:[#allocation3 + $0x28] sm:$0xff] %vm525, -inf
          %532 = vst.msk [vmem:[#allocation3 + $0x30] sm:$0xff] %vm525, -inf
          %533 = vst.msk [vmem:[#allocation3 + $0x38] sm:$0xff] %vm525, -inf
          %534 = vst.msk [vmem:[#allocation3 + $0x40] sm:$0xff] %vm525, -inf
          %535 = vst.msk [vmem:[#allocation3 + $0x48] sm:$0xff] %vm525, -inf
          %536 = vst.msk [vmem:[#allocation3 + $0x50] sm:$0xff] %vm525, -inf
          %537 = vst.msk [vmem:[#allocation3 + $0x58] sm:$0xff] %vm525, -inf
          %538 = vst.msk [vmem:[#allocation3 + $0x60] sm:$0xff] %vm525, -inf
          %539 = vst.msk [vmem:[#allocation3 + $0x68] sm:$0xff] %vm525, -inf
          %540 = vst.msk [vmem:[#allocation3 + $0x70] sm:$0xff] %vm525, -inf
          %541 = vst.msk [vmem:[#allocation3 + $0x78] sm:$0xff] %vm525, -inf
          %542 = vst.msk [vmem:[#allocation4] sm:$0xff] %vm525, 0.0
          %543 = vst.msk [vmem:[#allocation4 + $0x8] sm:$0xff] %vm525, 0.0
          %544 = vst.msk [vmem:[#allocation4 + $0x10] sm:$0xff] %vm525, 0.0
          %545 = vst.msk [vmem:[#allocation4 + $0x18] sm:$0xff] %vm525, 0.0
          %546 = vst.msk [vmem:[#allocation4 + $0x20] sm:$0xff] %vm525, 0.0
          %547 = vst.msk [vmem:[#allocation4 + $0x28] sm:$0xff] %vm525, 0.0
          %548 = vst.msk [vmem:[#allocation4 + $0x30] sm:$0xff] %vm525, 0.0
          %549 = vst.msk [vmem:[#allocation4 + $0x38] sm:$0xff] %vm525, 0.0
          %550 = vst.msk [vmem:[#allocation4 + $0x40] sm:$0xff] %vm525, 0.0
          %551 = vst.msk [vmem:[#allocation4 + $0x48] sm:$0xff] %vm525, 0.0
          %552 = vst.msk [vmem:[#allocation4 + $0x50] sm:$0xff] %vm525, 0.0
          %553 = vst.msk [vmem:[#allocation4 + $0x58] sm:$0xff] %vm525, 0.0
          %554 = vst.msk [vmem:[#allocation4 + $0x60] sm:$0xff] %vm525, 0.0
          %555 = vst.msk [vmem:[#allocation4 + $0x68] sm:$0xff] %vm525, 0.0
          %556 = vst.msk [vmem:[#allocation4 + $0x70] sm:$0xff] %vm525, 0.0
          %557 = vst.msk [vmem:[#allocation4 + $0x78] sm:$0xff] %vm525, 0.0
          %558 = vst.msk [vmem:[#allocation5] sm:$0xff] %vm443, 0.0
          %559 = vst.msk [vmem:[#allocation5 + $0x8] sm:$0xff] %vm443, 0.0
          %560 = vst.msk [vmem:[#allocation5 + $0x10] sm:$0xff] %vm443, 0.0
          %561 = vst.msk [vmem:[#allocation5 + $0x18] sm:$0xff] %vm443, 0.0
          %562 = vst.msk [vmem:[#allocation5 + $0x20] sm:$0xff] %vm443, 0.0
          %563 = vst.msk [vmem:[#allocation5 + $0x28] sm:$0xff] %vm443, 0.0
          %564 = vst.msk [vmem:[#allocation5 + $0x30] sm:$0xff] %vm443, 0.0
          %565 = vst.msk [vmem:[#allocation5 + $0x38] sm:$0xff] %vm443, 0.0
          %566 = vst.msk [vmem:[#allocation5 + $0x40] sm:$0xff] %vm443, 0.0
          %567 = vst.msk [vmem:[#allocation5 + $0x48] sm:$0xff] %vm443, 0.0
          %568 = vst.msk [vmem:[#allocation5 + $0x50] sm:$0xff] %vm443, 0.0
          %569 = vst.msk [vmem:[#allocation5 + $0x58] sm:$0xff] %vm443, 0.0
          %570 = vst.msk [vmem:[#allocation5 + $0x60] sm:$0xff] %vm443, 0.0
          %571 = vst.msk [vmem:[#allocation5 + $0x68] sm:$0xff] %vm443, 0.0
          %572 = vst.msk [vmem:[#allocation5 + $0x70] sm:$0xff] %vm443, 0.0
          %573 = vst.msk [vmem:[#allocation5 + $0x78] sm:$0xff] %vm443, 0.0
        $region97: #{tpu_custom_call.1} parent=84 // pred_fallthru
          _
        %v574 = vld [vmem:[%s5] sm:$0xf]
        %v575 = vld [vmem:[%s5 + $0x4] sm:$0xf]
        %v576 = vld [vmem:[%s5 + $0x8] sm:$0xf]
        %v577 = vld [vmem:[%s5 + $0xc] sm:$0xf]
        %v578 = vld [vmem:[%s5 + $0x10] sm:$0xf]
        %v579 = vld [vmem:[%s5 + $0x14] sm:$0xf]
        %v580 = vld [vmem:[%s5 + $0x18] sm:$0xf]
        %v581 = vld [vmem:[%s5 + $0x1c] sm:$0xf]
        %v582 = vld [vmem:[%s5 + $0x20] sm:$0xf]
        %v583 = vld [vmem:[%s385] sm:$0xf]
        %v584 = vld [vmem:[%s385 + $0x4] sm:$0xf]
        %v585 = vld [vmem:[%s385 + $0x8] sm:$0xf]
        %v586 = vld [vmem:[%s385 + $0xc] sm:$0xf]
        %v587 = vld [vmem:[%s385 + $0x10] sm:$0xf]
        %v588 = vld [vmem:[%s385 + $0x14] sm:$0xf]
        %v589 = vld [vmem:[%s385 + $0x18] sm:$0xf]
        %v590 = vld [vmem:[%s385 + $0x1c] sm:$0xf]
        %v591 = vld [vmem:[%s6] sm:$0xff]
        %v592 = vld [vmem:[%s6 + $0x8] sm:$0xff]
        %v593 = vld [vmem:[%s6 + $0x10] sm:$0xff]
        %v594 = vld [vmem:[%s6 + $0x18] sm:$0xff]
        %v595 = vld [vmem:[%s6 + $0x20] sm:$0xff]
        %v596 = vld [vmem:[%s6 + $0x28] sm:$0xff]
        %v597 = vld [vmem:[%s6 + $0x30] sm:$0xff]
        %v598 = vld [vmem:[%s6 + $0x38] sm:$0xff]
        %v599 = vld [vmem:[%s6 + $0x40] sm:$0xff]
        %601 = vset.pattern.permute.xlu0 0
        %602 = vperm.xlu0 %601, %v591
        %v603 = vpop.permute.xlu0 %602
        %606 = vset.pattern.permute.xlu0 0
        %607 = vperm.xlu0 %606, %v592
        %v608 = vpop.permute.xlu0 %607
        %611 = vset.pattern.permute.xlu0 0
        %612 = vperm.xlu0 %611, %v593
        %v613 = vpop.permute.xlu0 %612
        %616 = vset.pattern.permute.xlu0 0
        %617 = vperm.xlu0 %616, %v594
        %v618 = vpop.permute.xlu0 %617
        %621 = vset.pattern.permute.xlu0 0
        %622 = vperm.xlu0 %621, %v595
        %v623 = vpop.permute.xlu0 %622
        %626 = vset.pattern.permute.xlu0 0
        %627 = vperm.xlu0 %626, %v596
        %v628 = vpop.permute.xlu0 %627
        %631 = vset.pattern.permute.xlu0 0
        %632 = vperm.xlu0 %631, %v597
        %v633 = vpop.permute.xlu0 %632
        %636 = vset.pattern.permute.xlu0 0
        %637 = vperm.xlu0 %636, %v598
        %v638 = vpop.permute.xlu0 %637
        %641 = vset.pattern.permute.xlu0 0
        %642 = vperm.xlu0 %641, %v599
        %v643 = vpop.permute.xlu0 %642
        %v654 = vunpack.c.l.b16 %v574
        %v655 = vunpack.c.l.b16 %v575
        %v656 = vunpack.c.l.b16 %v576
        %v657 = vunpack.c.l.b16 %v577
        %v658 = vunpack.c.l.b16 %v578
        %v659 = vunpack.c.l.b16 %v579
        %v660 = vunpack.c.l.b16 %v580
        %v661 = vunpack.c.l.b16 %v581
        %v662 = vunpack.c.l.b16 %v582
        %v663 = vpack.c.b16 %v655, %v654
        %v664 = vpack.c.b16 %v657, %v656
        %v665 = vpack.c.b16 %v659, %v658
        %v666 = vpack.c.b16 %v661, %v660
        %v667 = vpack.c.b16 %v662, %v662
        %v676 = vunpack.c.l.b16 %v583
        %v677 = vunpack.c.l.b16 %v584
        %v678 = vunpack.c.l.b16 %v585
        %v679 = vunpack.c.l.b16 %v586
        %v680 = vunpack.c.l.b16 %v587
        %v681 = vunpack.c.l.b16 %v588
        %v682 = vunpack.c.l.b16 %v589
        %v683 = vunpack.c.l.b16 %v590
        %v684 = vpack.c.b16 %v677, %v676
        %v685 = vpack.c.b16 %v679, %v678
        %v686 = vpack.c.b16 %v681, %v680
        %v687 = vpack.c.b16 %v683, %v682
        %vm692 = vcmask 523264
        %v694 = vsel %vm692, %v663, 0
        %v697 = vsel %vm692, %v664, 0
        %v700 = vsel %vm692, %v665, 0
        %v703 = vsel %vm692, %v666, 0
        %v706 = vsel %vm692, %v667, 0
        %708 = vmatpush.bf16.msra.mxu0 0
        %709 = vmatpush.bf16.msra.mxu0 0
        %710 = vmatpush.bf16.msra.mxu0 0
        %711 = vmatpush.bf16.msra.mxu0 0
        %712 = vmatpush.bf16.msra.mxu0 %v687
        %713 = vmatpush.bf16.msra.mxu0 %v686
        %714 = vmatpush.bf16.msra.mxu0 %v685
        %715 = vmatpush.bf16.msra.mxu0 %v684
        %716 = vmatmul.bf16.gmra.mxu0 %v694
        %v717 = vpop.f32.mrf.mxu0
        %v718 = vadd.f32 %v603, %v717
        %v719 = vpop.f32.mrf.mxu0
        %v720 = vadd.f32 %v608, %v719
        %721 = vmatmul.bf16.gmra.mxu0 %v697
        %v722 = vpop.f32.mrf.mxu0
        %v723 = vadd.f32 %v613, %v722
        %v724 = vpop.f32.mrf.mxu0
        %v725 = vadd.f32 %v618, %v724
        %726 = vmatmul.bf16.gmra.mxu0 %v700
        %v727 = vpop.f32.mrf.mxu0
        %v728 = vadd.f32 %v623, %v727
        %v729 = vpop.f32.mrf.mxu0
        %v730 = vadd.f32 %v628, %v729
        %731 = vmatmul.bf16.gmra.mxu0 %v703
        %v732 = vpop.f32.mrf.mxu0
        %v733 = vadd.f32 %v633, %v732
        %v734 = vpop.f32.mrf.mxu0
        %v735 = vadd.f32 %v638, %v734
        %736 = vmatmul.bf16.gmra.mxu0 %v706
        %v737 = vpop.f32.mrf.mxu0
        %v738 = vadd.f32 %v643, %v737
        %v739 = vpop.f32.mrf.mxu0
        %740 = vdwg.mxu0
        %v741 = vpack.c.bf16 %v718, %v718
        %v742 = vpack.c.bf16 %v723, %v720
        %v743 = vpack.c.bf16 %v728, %v725
        %v744 = vpack.c.bf16 %v733, %v730
        %v745 = vpack.c.bf16 %v738, %v735
        %v746 = vld [vmem:[#allocation2] sm:$0xf]
        %v747 = vld [vmem:[#allocation2 + $0x4] sm:$0xf]
        %v748 = vld [vmem:[#allocation2 + $0x8] sm:$0xf]
        %v749 = vld [vmem:[#allocation2 + $0xc] sm:$0xf]
        %v750 = vld [vmem:[#allocation2 + $0x10] sm:$0xf]
        %v751 = vld [vmem:[#allocation2 + $0x14] sm:$0xf]
        %v752 = vld [vmem:[#allocation2 + $0x18] sm:$0xf]
        %v753 = vld [vmem:[#allocation2 + $0x1c] sm:$0xf]
        %v754 = vld [vmem:[#allocation2 + $0x20] sm:$0xf]
        %v755 = vld [vmem:[#allocation2 + $0x24] sm:$0xf]
        %v756 = vld [vmem:[#allocation2 + $0x28] sm:$0xf]
        %v757 = vld [vmem:[#allocation2 + $0x2c] sm:$0xf]
        %v758 = vld [vmem:[#allocation2 + $0x30] sm:$0xf]
        %v759 = vld [vmem:[#allocation2 + $0x34] sm:$0xf]
        %v760 = vld [vmem:[#allocation2 + $0x38] sm:$0xf]
        %v761 = vld [vmem:[#allocation2 + $0x3c] sm:$0xf]
        %v778 = vunpack.c.l.b16 %v746
        %v779 = vunpack.c.l.b16 %v747
        %v780 = vunpack.c.l.b16 %v748
        %v781 = vunpack.c.l.b16 %v749
        %v782 = vunpack.c.l.b16 %v750
        %v783 = vunpack.c.l.b16 %v751
        %v784 = vunpack.c.l.b16 %v752
        %v785 = vunpack.c.l.b16 %v753
        %v786 = vunpack.c.l.b16 %v754
        %v787 = vunpack.c.l.b16 %v755
        %v788 = vunpack.c.l.b16 %v756
        %v789 = vunpack.c.l.b16 %v757
        %v790 = vunpack.c.l.b16 %v758
        %v791 = vunpack.c.l.b16 %v759
        %v792 = vunpack.c.l.b16 %v760
        %v793 = vunpack.c.l.b16 %v761
        %v794 = vpack.c.b16 %v779, %v778
        %v795 = vpack.c.b16 %v781, %v780
        %v796 = vpack.c.b16 %v783, %v782
        %v797 = vpack.c.b16 %v785, %v784
        %v798 = vpack.c.b16 %v787, %v786
        %v799 = vpack.c.b16 %v789, %v788
        %v800 = vpack.c.b16 %v791, %v790
        %v801 = vpack.c.b16 %v793, %v792
        %vm802 = vcmask 64512
        %v804 = vsel %vm802, %v794, 0
        %v807 = vsel %vm802, %v795, 0
        %v810 = vsel %vm802, %v796, 0
        %v813 = vsel %vm802, %v797, 0
        %v816 = vsel %vm802, %v798, 0
        %v819 = vsel %vm802, %v799, 0
        %v822 = vsel %vm802, %v800, 0
        %v825 = vsel %vm802, %v801, 0
        %vm827 = vcmask 1043456
        %v829 = vsel %vm827, %v741, 0
        %831 = vmatpush.bf16.msra.mxu0 0
        %832 = vmatpush.bf16.msra.mxu0 0
        %833 = vmatpush.bf16.msra.mxu0 0
        %834 = vmatpush.bf16.msra.mxu0 0
        %835 = vmatpush.bf16.msra.mxu0 0
        %836 = vmatpush.bf16.msra.mxu0 0
        %837 = vmatpush.bf16.msra.mxu0 0
        %838 = vmatpush.bf16.msra.mxu0 %v829
        %839 = vmatmul.bf16.gmra.mxu0 %v804
        %v840 = vpop.f32.mrf.mxu0
        %v841 = vadd.f32 0.0, %v840
        %v842 = vpop.f32.mrf.mxu0
        %v843 = vadd.f32 0.0, %v842
        %844 = vmatmul.bf16.gmra.mxu0 %v807
        %v845 = vpop.f32.mrf.mxu0
        %v846 = vadd.f32 0.0, %v845
        %v847 = vpop.f32.mrf.mxu0
        %v848 = vadd.f32 0.0, %v847
        %849 = vmatmul.bf16.gmra.mxu0 %v810
        %v850 = vpop.f32.mrf.mxu0
        %v851 = vadd.f32 0.0, %v850
        %v852 = vpop.f32.mrf.mxu0
        %v853 = vadd.f32 0.0, %v852
        %854 = vmatmul.bf16.gmra.mxu0 %v813
        %v855 = vpop.f32.mrf.mxu0
        %v856 = vadd.f32 0.0, %v855
        %v857 = vpop.f32.mrf.mxu0
        %v858 = vadd.f32 0.0, %v857
        %859 = vmatmul.bf16.gmra.mxu0 %v816
        %v860 = vpop.f32.mrf.mxu0
        %v861 = vadd.f32 0.0, %v860
        %v862 = vpop.f32.mrf.mxu0
        %v863 = vadd.f32 0.0, %v862
        %864 = vmatmul.bf16.gmra.mxu0 %v819
        %v865 = vpop.f32.mrf.mxu0
        %v866 = vadd.f32 0.0, %v865
        %v867 = vpop.f32.mrf.mxu0
        %v868 = vadd.f32 0.0, %v867
        %869 = vmatmul.bf16.gmra.mxu0 %v822
        %v870 = vpop.f32.mrf.mxu0
        %v871 = vadd.f32 0.0, %v870
        %v872 = vpop.f32.mrf.mxu0
        %v873 = vadd.f32 0.0, %v872
        %874 = vmatmul.bf16.gmra.mxu0 %v825
        %v875 = vpop.f32.mrf.mxu0
        %v876 = vadd.f32 0.0, %v875
        %v877 = vpop.f32.mrf.mxu0
        %v878 = vadd.f32 0.0, %v877
        %879 = vdwg.mxu0
        %v880 = vld [vmem:[#allocation3] sm:$0xff]
        %v881 = vld [vmem:[#allocation3 + $0x8] sm:$0xff]
        %v882 = vld [vmem:[#allocation3 + $0x10] sm:$0xff]
        %v883 = vld [vmem:[#allocation3 + $0x18] sm:$0xff]
        %v884 = vld [vmem:[#allocation3 + $0x20] sm:$0xff]
        %v885 = vld [vmem:[#allocation3 + $0x28] sm:$0xff]
        %v886 = vld [vmem:[#allocation3 + $0x30] sm:$0xff]
        %v887 = vld [vmem:[#allocation3 + $0x38] sm:$0xff]
        %v888 = vld [vmem:[#allocation3 + $0x40] sm:$0xff]
        %v889 = vld [vmem:[#allocation3 + $0x48] sm:$0xff]
        %v890 = vld [vmem:[#allocation3 + $0x50] sm:$0xff]
        %v891 = vld [vmem:[#allocation3 + $0x58] sm:$0xff]
        %v892 = vld [vmem:[#allocation3 + $0x60] sm:$0xff]
        %v893 = vld [vmem:[#allocation3 + $0x68] sm:$0xff]
        %v894 = vld [vmem:[#allocation3 + $0x70] sm:$0xff]
        %v895 = vld [vmem:[#allocation3 + $0x78] sm:$0xff]
        %896 = vmax.xlane.f32.xlu0 %v841
        %v897 = vpop.xlane.xlu0 %896
        %898 = vmax.xlane.f32.xlu0 %v843
        %v899 = vpop.xlane.xlu0 %898
        %900 = vmax.xlane.f32.xlu0 %v846
        %v901 = vpop.xlane.xlu0 %900
        %902 = vmax.xlane.f32.xlu0 %v848
        %v903 = vpop.xlane.xlu0 %902
        %904 = vmax.xlane.f32.xlu0 %v851
        %v905 = vpop.xlane.xlu0 %904
        %906 = vmax.xlane.f32.xlu0 %v853
        %v907 = vpop.xlane.xlu0 %906
        %908 = vmax.xlane.f32.xlu0 %v856
        %v909 = vpop.xlane.xlu0 %908
        %910 = vmax.xlane.f32.xlu0 %v858
        %v911 = vpop.xlane.xlu0 %910
        %912 = vmax.xlane.f32.xlu0 %v861
        %v913 = vpop.xlane.xlu0 %912
        %914 = vmax.xlane.f32.xlu0 %v863
        %v915 = vpop.xlane.xlu0 %914
        %916 = vmax.xlane.f32.xlu0 %v866
        %v917 = vpop.xlane.xlu0 %916
        %918 = vmax.xlane.f32.xlu0 %v868
        %v919 = vpop.xlane.xlu0 %918
        %920 = vmax.xlane.f32.xlu0 %v871
        %v921 = vpop.xlane.xlu0 %920
        %922 = vmax.xlane.f32.xlu0 %v873
        %v923 = vpop.xlane.xlu0 %922
        %924 = vmax.xlane.f32.xlu0 %v876
        %v925 = vpop.xlane.xlu0 %924
        %926 = vmax.xlane.f32.xlu0 %v878
        %v927 = vpop.xlane.xlu0 %926
        %v928 = vmax.f32 %v880, %v897
        %v929 = vmax.f32 %v881, %v899
        %v930 = vmax.f32 %v882, %v901
        %v931 = vmax.f32 %v883, %v903
        %v932 = vmax.f32 %v884, %v905
        %v933 = vmax.f32 %v885, %v907
        %v934 = vmax.f32 %v886, %v909
        %v935 = vmax.f32 %v887, %v911
        %v936 = vmax.f32 %v888, %v913
        %v937 = vmax.f32 %v889, %v915
        %v938 = vmax.f32 %v890, %v917
        %v939 = vmax.f32 %v891, %v919
        %v940 = vmax.f32 %v892, %v921
        %v941 = vmax.f32 %v893, %v923
        %v942 = vmax.f32 %v894, %v925
        %v943 = vmax.f32 %v895, %v927
        %v944 = vsub.f32 %v880, %v928
        %v945 = vsub.f32 %v881, %v929
        %v946 = vsub.f32 %v882, %v930
        %v947 = vsub.f32 %v883, %v931
        %v948 = vsub.f32 %v884, %v932
        %v949 = vsub.f32 %v885, %v933
        %v950 = vsub.f32 %v886, %v934
        %v951 = vsub.f32 %v887, %v935
        %v952 = vsub.f32 %v888, %v936
        %v953 = vsub.f32 %v889, %v937
        %v954 = vsub.f32 %v890, %v938
        %v955 = vsub.f32 %v891, %v939
        %v956 = vsub.f32 %v892, %v940
        %v957 = vsub.f32 %v893, %v941
        %v958 = vsub.f32 %v894, %v942
        %v959 = vsub.f32 %v895, %v943
        %v960 = vmul.f32 %v944, 1.442695
        %v961 = vpow.pop %v960
        %v962 = vmul.f32 %v945, 1.442695
        %v963 = vpow.pop %v962
        %v964 = vmul.f32 %v946, 1.442695
        %v965 = vpow.pop %v964
        %v966 = vmul.f32 %v947, 1.442695
        %v967 = vpow.pop %v966
        %v968 = vmul.f32 %v948, 1.442695
        %v969 = vpow.pop %v968
        %v970 = vmul.f32 %v949, 1.442695
        %v971 = vpow.pop %v970
        %v972 = vmul.f32 %v950, 1.442695
        %v973 = vpow.pop %v972
        %v974 = vmul.f32 %v951, 1.442695
        %v975 = vpow.pop %v974
        %v976 = vmul.f32 %v952, 1.442695
        %v977 = vpow.pop %v976
        %v978 = vmul.f32 %v953, 1.442695
        %v979 = vpow.pop %v978
        %v980 = vmul.f32 %v954, 1.442695
        %v981 = vpow.pop %v980
        %v982 = vmul.f32 %v955, 1.442695
        %v983 = vpow.pop %v982
        %v984 = vmul.f32 %v956, 1.442695
        %v985 = vpow.pop %v984
        %v986 = vmul.f32 %v957, 1.442695
        %v987 = vpow.pop %v986
        %v988 = vmul.f32 %v958, 1.442695
        %v989 = vpow.pop %v988
        %v990 = vmul.f32 %v959, 1.442695
        %v991 = vpow.pop %v990
        %993 = vset.pattern.permute.xlu0 0
        %994 = vperm.xlu0 %993, %v928
        %v995 = vpop.permute.xlu0 %994
        %998 = vset.pattern.permute.xlu0 0
        %999 = vperm.xlu0 %998, %v929
        %v1000 = vpop.permute.xlu0 %999
        %1003 = vset.pattern.permute.xlu0 0
        %1004 = vperm.xlu0 %1003, %v930
        %v1005 = vpop.permute.xlu0 %1004
        %1008 = vset.pattern.permute.xlu0 0
        %1009 = vperm.xlu0 %1008, %v931
        %v1010 = vpop.permute.xlu0 %1009
        %1013 = vset.pattern.permute.xlu0 0
        %1014 = vperm.xlu0 %1013, %v932
        %v1015 = vpop.permute.xlu0 %1014
        %1018 = vset.pattern.permute.xlu0 0
        %1019 = vperm.xlu0 %1018, %v933
        %v1020 = vpop.permute.xlu0 %1019
        %1023 = vset.pattern.permute.xlu0 0
        %1024 = vperm.xlu0 %1023, %v934
        %v1025 = vpop.permute.xlu0 %1024
        %1028 = vset.pattern.permute.xlu0 0
        %1029 = vperm.xlu0 %1028, %v935
        %v1030 = vpop.permute.xlu0 %1029
        %1033 = vset.pattern.permute.xlu0 0
        %1034 = vperm.xlu0 %1033, %v936
        %v1035 = vpop.permute.xlu0 %1034
        %1038 = vset.pattern.permute.xlu0 0
        %1039 = vperm.xlu0 %1038, %v937
        %v1040 = vpop.permute.xlu0 %1039
        %1043 = vset.pattern.permute.xlu0 0
        %1044 = vperm.xlu0 %1043, %v938
        %v1045 = vpop.permute.xlu0 %1044
        %1048 = vset.pattern.permute.xlu0 0
        %1049 = vperm.xlu0 %1048, %v939
        %v1050 = vpop.permute.xlu0 %1049
        %1053 = vset.pattern.permute.xlu0 0
        %1054 = vperm.xlu0 %1053, %v940
        %v1055 = vpop.permute.xlu0 %1054
        %1058 = vset.pattern.permute.xlu0 0
        %1059 = vperm.xlu0 %1058, %v941
        %v1060 = vpop.permute.xlu0 %1059
        %1063 = vset.pattern.permute.xlu0 0
        %1064 = vperm.xlu0 %1063, %v942
        %v1065 = vpop.permute.xlu0 %1064
        %1068 = vset.pattern.permute.xlu0 0
        %1069 = vperm.xlu0 %1068, %v943
        %v1070 = vpop.permute.xlu0 %1069
        %v1072 = vsub.f32 %v841, %v995
        %v1073 = vsub.f32 %v843, %v1000
        %v1074 = vsub.f32 %v846, %v1005
        %v1075 = vsub.f32 %v848, %v1010
        %v1076 = vsub.f32 %v851, %v1015
        %v1077 = vsub.f32 %v853, %v1020
        %v1078 = vsub.f32 %v856, %v1025
        %v1079 = vsub.f32 %v858, %v1030
        %v1080 = vsub.f32 %v861, %v1035
        %v1081 = vsub.f32 %v863, %v1040
        %v1082 = vsub.f32 %v866, %v1045
        %v1083 = vsub.f32 %v868, %v1050
        %v1084 = vsub.f32 %v871, %v1055
        %v1085 = vsub.f32 %v873, %v1060
        %v1086 = vsub.f32 %v876, %v1065
        %v1087 = vsub.f32 %v878, %v1070
        %v1088 = vmul.f32 %v1072, 1.442695
        %v1089 = vpow.pop %v1088
        %v1090 = vmul.f32 %v1073, 1.442695
        %v1091 = vpow.pop %v1090
        %v1092 = vmul.f32 %v1074, 1.442695
        %v1093 = vpow.pop %v1092
        %v1094 = vmul.f32 %v1075, 1.442695
        %v1095 = vpow.pop %v1094
        %v1096 = vmul.f32 %v1076, 1.442695
        %v1097 = vpow.pop %v1096
        %v1098 = vmul.f32 %v1077, 1.442695
        %v1099 = vpow.pop %v1098
        %v1100 = vmul.f32 %v1078, 1.442695
        %v1101 = vpow.pop %v1100
        %v1102 = vmul.f32 %v1079, 1.442695
        %v1103 = vpow.pop %v1102
        %v1104 = vmul.f32 %v1080, 1.442695
        %v1105 = vpow.pop %v1104
        %v1106 = vmul.f32 %v1081, 1.442695
        %v1107 = vpow.pop %v1106
        %v1108 = vmul.f32 %v1082, 1.442695
        %v1109 = vpow.pop %v1108
        %v1110 = vmul.f32 %v1083, 1.442695
        %v1111 = vpow.pop %v1110
        %v1112 = vmul.f32 %v1084, 1.442695
        %v1113 = vpow.pop %v1112
        %v1114 = vmul.f32 %v1085, 1.442695
        %v1115 = vpow.pop %v1114
        %v1116 = vmul.f32 %v1086, 1.442695
        %v1117 = vpow.pop %v1116
        %v1118 = vmul.f32 %v1087, 1.442695
        %v1119 = vpow.pop %v1118
        %v1120 = vld [vmem:[#allocation4] sm:$0xff]
        %v1121 = vld [vmem:[#allocation4 + $0x8] sm:$0xff]
        %v1122 = vld [vmem:[#allocation4 + $0x10] sm:$0xff]
        %v1123 = vld [vmem:[#allocation4 + $0x18] sm:$0xff]
        %v1124 = vld [vmem:[#allocation4 + $0x20] sm:$0xff]
        %v1125 = vld [vmem:[#allocation4 + $0x28] sm:$0xff]
        %v1126 = vld [vmem:[#allocation4 + $0x30] sm:$0xff]
        %v1127 = vld [vmem:[#allocation4 + $0x38] sm:$0xff]
        %v1128 = vld [vmem:[#allocation4 + $0x40] sm:$0xff]
        %v1129 = vld [vmem:[#allocation4 + $0x48] sm:$0xff]
        %v1130 = vld [vmem:[#allocation4 + $0x50] sm:$0xff]
        %v1131 = vld [vmem:[#allocation4 + $0x58] sm:$0xff]
        %v1132 = vld [vmem:[#allocation4 + $0x60] sm:$0xff]
        %v1133 = vld [vmem:[#allocation4 + $0x68] sm:$0xff]
        %v1134 = vld [vmem:[#allocation4 + $0x70] sm:$0xff]
        %v1135 = vld [vmem:[#allocation4 + $0x78] sm:$0xff]
        %v1136 = vmul.f32 %v961, %v1120
        %v1137 = vmul.f32 %v963, %v1121
        %v1138 = vmul.f32 %v965, %v1122
        %v1139 = vmul.f32 %v967, %v1123
        %v1140 = vmul.f32 %v969, %v1124
        %v1141 = vmul.f32 %v971, %v1125
        %v1142 = vmul.f32 %v973, %v1126
        %v1143 = vmul.f32 %v975, %v1127
        %v1144 = vmul.f32 %v977, %v1128
        %v1145 = vmul.f32 %v979, %v1129
        %v1146 = vmul.f32 %v981, %v1130
        %v1147 = vmul.f32 %v983, %v1131
        %v1148 = vmul.f32 %v985, %v1132
        %v1149 = vmul.f32 %v987, %v1133
        %v1150 = vmul.f32 %v989, %v1134
        %v1151 = vmul.f32 %v991, %v1135
        %1152 = vadd.xlane.f32.xlu0 %v1089
        %v1153 = vpop.xlane.xlu0 %1152
        %1154 = vadd.xlane.f32.xlu0 %v1091
        %v1155 = vpop.xlane.xlu0 %1154
        %1156 = vadd.xlane.f32.xlu0 %v1093
        %v1157 = vpop.xlane.xlu0 %1156
        %1158 = vadd.xlane.f32.xlu0 %v1095
        %v1159 = vpop.xlane.xlu0 %1158
        %1160 = vadd.xlane.f32.xlu0 %v1097
        %v1161 = vpop.xlane.xlu0 %1160
        %1162 = vadd.xlane.f32.xlu0 %v1099
        %v1163 = vpop.xlane.xlu0 %1162
        %1164 = vadd.xlane.f32.xlu0 %v1101
        %v1165 = vpop.xlane.xlu0 %1164
        %1166 = vadd.xlane.f32.xlu0 %v1103
        %v1167 = vpop.xlane.xlu0 %1166
        %1168 = vadd.xlane.f32.xlu0 %v1105
        %v1169 = vpop.xlane.xlu0 %1168
        %1170 = vadd.xlane.f32.xlu0 %v1107
        %v1171 = vpop.xlane.xlu0 %1170
        %1172 = vadd.xlane.f32.xlu0 %v1109
        %v1173 = vpop.xlane.xlu0 %1172
        %1174 = vadd.xlane.f32.xlu0 %v1111
        %v1175 = vpop.xlane.xlu0 %1174
        %1176 = vadd.xlane.f32.xlu0 %v1113
        %v1177 = vpop.xlane.xlu0 %1176
        %1178 = vadd.xlane.f32.xlu0 %v1115
        %v1179 = vpop.xlane.xlu0 %1178
        %1180 = vadd.xlane.f32.xlu0 %v1117
        %v1181 = vpop.xlane.xlu0 %1180
        %1182 = vadd.xlane.f32.xlu0 %v1119
        %v1183 = vpop.xlane.xlu0 %1182
        %v1184 = vadd.f32 %v1136, %v1153
        %v1185 = vadd.f32 %v1137, %v1155
        %v1186 = vadd.f32 %v1138, %v1157
        %v1187 = vadd.f32 %v1139, %v1159
        %v1188 = vadd.f32 %v1140, %v1161
        %v1189 = vadd.f32 %v1141, %v1163
        %v1190 = vadd.f32 %v1142, %v1165
        %v1191 = vadd.f32 %v1143, %v1167
        %v1192 = vadd.f32 %v1144, %v1169
        %v1193 = vadd.f32 %v1145, %v1171
        %v1194 = vadd.f32 %v1146, %v1173
        %v1195 = vadd.f32 %v1147, %v1175
        %v1196 = vadd.f32 %v1148, %v1177
        %v1197 = vadd.f32 %v1149, %v1179
        %v1198 = vadd.f32 %v1150, %v1181
        %v1199 = vadd.f32 %v1151, %v1183
        %vm1200 = vcmask 7168
        %1201 = vst.msk [vmem:[#allocation4] sm:$0xff] %vm1200, %v1184
        %1202 = vst.msk [vmem:[#allocation4 + $0x8] sm:$0xff] %vm1200, %v1185
        %1203 = vst.msk [vmem:[#allocation4 + $0x10] sm:$0xff] %vm1200, %v1186
        %1204 = vst.msk [vmem:[#allocation4 + $0x18] sm:$0xff] %vm1200, %v1187
        %1205 = vst.msk [vmem:[#allocation4 + $0x20] sm:$0xff] %vm1200, %v1188
        %1206 = vst.msk [vmem:[#allocation4 + $0x28] sm:$0xff] %vm1200, %v1189
        %1207 = vst.msk [vmem:[#allocation4 + $0x30] sm:$0xff] %vm1200, %v1190
        %1208 = vst.msk [vmem:[#allocation4 + $0x38] sm:$0xff] %vm1200, %v1191
        %1209 = vst.msk [vmem:[#allocation4 + $0x40] sm:$0xff] %vm1200, %v1192
        %1210 = vst.msk [vmem:[#allocation4 + $0x48] sm:$0xff] %vm1200, %v1193
        %1211 = vst.msk [vmem:[#allocation4 + $0x50] sm:$0xff] %vm1200, %v1194
        %1212 = vst.msk [vmem:[#allocation4 + $0x58] sm:$0xff] %vm1200, %v1195
        %1213 = vst.msk [vmem:[#allocation4 + $0x60] sm:$0xff] %vm1200, %v1196
        %1214 = vst.msk [vmem:[#allocation4 + $0x68] sm:$0xff] %vm1200, %v1197
        %1215 = vst.msk [vmem:[#allocation4 + $0x70] sm:$0xff] %vm1200, %v1198
        %1216 = vst.msk [vmem:[#allocation4 + $0x78] sm:$0xff] %vm1200, %v1199
        %v1217 = vld [vmem:[#allocation5] sm:$0xff]
        %v1218 = vld [vmem:[#allocation5 + $0x8] sm:$0xff]
        %v1219 = vld [vmem:[#allocation5 + $0x10] sm:$0xff]
        %v1220 = vld [vmem:[#allocation5 + $0x18] sm:$0xff]
        %v1221 = vld [vmem:[#allocation5 + $0x20] sm:$0xff]
        %v1222 = vld [vmem:[#allocation5 + $0x28] sm:$0xff]
        %v1223 = vld [vmem:[#allocation5 + $0x30] sm:$0xff]
        %v1224 = vld [vmem:[#allocation5 + $0x38] sm:$0xff]
        %v1225 = vld [vmem:[#allocation5 + $0x40] sm:$0xff]
        %v1226 = vld [vmem:[#allocation5 + $0x48] sm:$0xff]
        %v1227 = vld [vmem:[#allocation5 + $0x50] sm:$0xff]
        %v1228 = vld [vmem:[#allocation5 + $0x58] sm:$0xff]
        %v1229 = vld [vmem:[#allocation5 + $0x60] sm:$0xff]
        %v1230 = vld [vmem:[#allocation5 + $0x68] sm:$0xff]
        %v1231 = vld [vmem:[#allocation5 + $0x70] sm:$0xff]
        %v1232 = vld [vmem:[#allocation5 + $0x78] sm:$0xff]
        %1234 = vset.pattern.permute.xlu0 0
        %1235 = vperm.xlu0 %1234, %v961
        %v1236 = vpop.permute.xlu0 %1235
        %1239 = vset.pattern.permute.xlu0 0
        %1240 = vperm.xlu0 %1239, %v963
        %v1241 = vpop.permute.xlu0 %1240
        %1244 = vset.pattern.permute.xlu0 0
        %1245 = vperm.xlu0 %1244, %v965
        %v1246 = vpop.permute.xlu0 %1245
        %1249 = vset.pattern.permute.xlu0 0
        %1250 = vperm.xlu0 %1249, %v967
        %v1251 = vpop.permute.xlu0 %1250
        %1254 = vset.pattern.permute.xlu0 0
        %1255 = vperm.xlu0 %1254, %v969
        %v1256 = vpop.permute.xlu0 %1255
        %1259 = vset.pattern.permute.xlu0 0
        %1260 = vperm.xlu0 %1259, %v971
        %v1261 = vpop.permute.xlu0 %1260
        %1264 = vset.pattern.permute.xlu0 0
        %1265 = vperm.xlu0 %1264, %v973
        %v1266 = vpop.permute.xlu0 %1265
        %1269 = vset.pattern.permute.xlu0 0
        %1270 = vperm.xlu0 %1269, %v975
        %v1271 = vpop.permute.xlu0 %1270
        %1274 = vset.pattern.permute.xlu0 0
        %1275 = vperm.xlu0 %1274, %v977
        %v1276 = vpop.permute.xlu0 %1275
        %1279 = vset.pattern.permute.xlu0 0
        %1280 = vperm.xlu0 %1279, %v979
        %v1281 = vpop.permute.xlu0 %1280
        %1284 = vset.pattern.permute.xlu0 0
        %1285 = vperm.xlu0 %1284, %v981
        %v1286 = vpop.permute.xlu0 %1285
        %1289 = vset.pattern.permute.xlu0 0
        %1290 = vperm.xlu0 %1289, %v983
        %v1291 = vpop.permute.xlu0 %1290
        %1294 = vset.pattern.permute.xlu0 0
        %1295 = vperm.xlu0 %1294, %v985
        %v1296 = vpop.permute.xlu0 %1295
        %1299 = vset.pattern.permute.xlu0 0
        %1300 = vperm.xlu0 %1299, %v987
        %v1301 = vpop.permute.xlu0 %1300
        %1304 = vset.pattern.permute.xlu0 0
        %1305 = vperm.xlu0 %1304, %v989
        %v1306 = vpop.permute.xlu0 %1305
        %1309 = vset.pattern.permute.xlu0 0
        %1310 = vperm.xlu0 %1309, %v991
        %v1311 = vpop.permute.xlu0 %1310
        %v1313 = vmul.f32 %v1236, %v1217
        %v1314 = vmul.f32 %v1241, %v1218
        %v1315 = vmul.f32 %v1246, %v1219
        %v1316 = vmul.f32 %v1251, %v1220
        %v1317 = vmul.f32 %v1256, %v1221
        %v1318 = vmul.f32 %v1261, %v1222
        %v1319 = vmul.f32 %v1266, %v1223
        %v1320 = vmul.f32 %v1271, %v1224
        %v1321 = vmul.f32 %v1276, %v1225
        %v1322 = vmul.f32 %v1281, %v1226
        %v1323 = vmul.f32 %v1286, %v1227
        %v1324 = vmul.f32 %v1291, %v1228
        %v1325 = vmul.f32 %v1296, %v1229
        %v1326 = vmul.f32 %v1301, %v1230
        %v1327 = vmul.f32 %v1306, %v1231
        %v1328 = vmul.f32 %v1311, %v1232
        %v1329 = vpack.c.bf16 %v1091, %v1089
        %v1330 = vpack.c.bf16 %v1095, %v1093
        %v1331 = vpack.c.bf16 %v1099, %v1097
        %v1332 = vpack.c.bf16 %v1103, %v1101
        %v1333 = vpack.c.bf16 %v1107, %v1105
        %v1334 = vpack.c.bf16 %v1111, %v1109
        %v1335 = vpack.c.bf16 %v1115, %v1113
        %v1336 = vpack.c.bf16 %v1119, %v1117
        %1337 = vmatpush.bf16.xpose.msra.mxu0 0
        %1338 = vmatpush.bf16.xpose.msra.mxu0 0
        %1339 = vmatpush.bf16.xpose.msra.mxu0 0
        %1340 = vmatpush.bf16.xpose.msra.mxu0 0
        %1341 = vmatpush.bf16.xpose.msra.mxu0 %v745
        %1342 = vmatpush.bf16.xpose.msra.mxu0 %v744
        %1343 = vmatpush.bf16.xpose.msra.mxu0 %v743
        %1344 = vmatpush.bf16.xpose.msra.mxu0 %v742
        %1345 = vmatmul.bf16.gmra.mxu0 %v1329
        %v1346 = vpop.f32.mrf.mxu0
        %v1347 = vadd.f32 0.0, %v1346
        %v1348 = vpop.f32.mrf.mxu0
        %v1349 = vadd.f32 0.0, %v1348
        %1350 = vmatmul.bf16.gmra.mxu0 %v1330
        %v1351 = vpop.f32.mrf.mxu0
        %v1352 = vadd.f32 0.0, %v1351
        %v1353 = vpop.f32.mrf.mxu0
        %v1354 = vadd.f32 0.0, %v1353
        %1355 = vmatmul.bf16.gmra.mxu0 %v1331
        %v1356 = vpop.f32.mrf.mxu0
        %v1357 = vadd.f32 0.0, %v1356
        %v1358 = vpop.f32.mrf.mxu0
        %v1359 = vadd.f32 0.0, %v1358
        %1360 = vmatmul.bf16.gmra.mxu0 %v1332
        %v1361 = vpop.f32.mrf.mxu0
        %v1362 = vadd.f32 0.0, %v1361
        %v1363 = vpop.f32.mrf.mxu0
        %v1364 = vadd.f32 0.0, %v1363
        %1365 = vmatmul.bf16.gmra.mxu0 %v1333
        %v1366 = vpop.f32.mrf.mxu0
        %v1367 = vadd.f32 0.0, %v1366
        %v1368 = vpop.f32.mrf.mxu0
        %v1369 = vadd.f32 0.0, %v1368
        %1370 = vmatmul.bf16.gmra.mxu0 %v1334
        %v1371 = vpop.f32.mrf.mxu0
        %v1372 = vadd.f32 0.0, %v1371
        %v1373 = vpop.f32.mrf.mxu0
        %v1374 = vadd.f32 0.0, %v1373
        %1375 = vmatmul.bf16.gmra.mxu0 %v1335
        %v1376 = vpop.f32.mrf.mxu0
        %v1377 = vadd.f32 0.0, %v1376
        %v1378 = vpop.f32.mrf.mxu0
        %v1379 = vadd.f32 0.0, %v1378
        %1380 = vmatmul.bf16.gmra.mxu0 %v1336
        %v1381 = vpop.f32.mrf.mxu0
        %v1382 = vadd.f32 0.0, %v1381
        %v1383 = vpop.f32.mrf.mxu0
        %v1384 = vadd.f32 0.0, %v1383
        %1385 = vdwg.mxu0
        %v1386 = vadd.f32 %v1313, %v1347
        %v1387 = vadd.f32 %v1314, %v1349
        %v1388 = vadd.f32 %v1315, %v1352
        %v1389 = vadd.f32 %v1316, %v1354
        %v1390 = vadd.f32 %v1317, %v1357
        %v1391 = vadd.f32 %v1318, %v1359
        %v1392 = vadd.f32 %v1319, %v1362
        %v1393 = vadd.f32 %v1320, %v1364
        %v1394 = vadd.f32 %v1321, %v1367
        %v1395 = vadd.f32 %v1322, %v1369
        %v1396 = vadd.f32 %v1323, %v1372
        %v1397 = vadd.f32 %v1324, %v1374
        %v1398 = vadd.f32 %v1325, %v1377
        %v1399 = vadd.f32 %v1326, %v1379
        %v1400 = vadd.f32 %v1327, %v1382
        %v1401 = vadd.f32 %v1328, %v1384
        %1402 = vst.msk [vmem:[#allocation5] sm:$0xff] %vm692, %v1386
        %1403 = vst.msk [vmem:[#allocation5 + $0x8] sm:$0xff] %vm692, %v1387
        %1404 = vst.msk [vmem:[#allocation5 + $0x10] sm:$0xff] %vm692, %v1388
        %1405 = vst.msk [vmem:[#allocation5 + $0x18] sm:$0xff] %vm692, %v1389
        %1406 = vst.msk [vmem:[#allocation5 + $0x20] sm:$0xff] %vm692, %v1390
        %1407 = vst.msk [vmem:[#allocation5 + $0x28] sm:$0xff] %vm692, %v1391
        %1408 = vst.msk [vmem:[#allocation5 + $0x30] sm:$0xff] %vm692, %v1392
        %1409 = vst.msk [vmem:[#allocation5 + $0x38] sm:$0xff] %vm692, %v1393
        %1410 = vst.msk [vmem:[#allocation5 + $0x40] sm:$0xff] %vm692, %v1394
        %1411 = vst.msk [vmem:[#allocation5 + $0x48] sm:$0xff] %vm692, %v1395
        %1412 = vst.msk [vmem:[#allocation5 + $0x50] sm:$0xff] %vm692, %v1396
        %1413 = vst.msk [vmem:[#allocation5 + $0x58] sm:$0xff] %vm692, %v1397
        %1414 = vst.msk [vmem:[#allocation5 + $0x60] sm:$0xff] %vm692, %v1398
        %1415 = vst.msk [vmem:[#allocation5 + $0x68] sm:$0xff] %vm692, %v1399
        %1416 = vst.msk [vmem:[#allocation5 + $0x70] sm:$0xff] %vm692, %v1400
        %1417 = vst.msk [vmem:[#allocation5 + $0x78] sm:$0xff] %vm692, %v1401
        %1418 = vst.msk [vmem:[#allocation3] sm:$0xff] %vm1200, %v928
        %1419 = vst.msk [vmem:[#allocation3 + $0x8] sm:$0xff] %vm1200, %v929
        %1420 = vst.msk [vmem:[#allocation3 + $0x10] sm:$0xff] %vm1200, %v930
        %1421 = vst.msk [vmem:[#allocation3 + $0x18] sm:$0xff] %vm1200, %v931
        %1422 = vst.msk [vmem:[#allocation3 + $0x20] sm:$0xff] %vm1200, %v932
        %1423 = vst.msk [vmem:[#allocation3 + $0x28] sm:$0xff] %vm1200, %v933
        %1424 = vst.msk [vmem:[#allocation3 + $0x30] sm:$0xff] %vm1200, %v934
        %1425 = vst.msk [vmem:[#allocation3 + $0x38] sm:$0xff] %vm1200, %v935
        %1426 = vst.msk [vmem:[#allocation3 + $0x40] sm:$0xff] %vm1200, %v936
        %1427 = vst.msk [vmem:[#allocation3 + $0x48] sm:$0xff] %vm1200, %v937
        %1428 = vst.msk [vmem:[#allocation3 + $0x50] sm:$0xff] %vm1200, %v938
        %1429 = vst.msk [vmem:[#allocation3 + $0x58] sm:$0xff] %vm1200, %v939
        %1430 = vst.msk [vmem:[#allocation3 + $0x60] sm:$0xff] %vm1200, %v940
        %1431 = vst.msk [vmem:[#allocation3 + $0x68] sm:$0xff] %vm1200, %v941
        %1432 = vst.msk [vmem:[#allocation3 + $0x70] sm:$0xff] %vm1200, %v942
        %1433 = vst.msk [vmem:[#allocation3 + $0x78] sm:$0xff] %vm1200, %v943
        %p1434 = scmp.eq.s32.totalorder %s32, 1
        // Predicated region
        $region98: #{tpu_custom_call.1} parent=84 // pred_check
          %p1435 = pneg %p1434
        $region99: #{tpu_custom_call.1} parent=84 // pred_check_branch
          %1437 = sbr.rel (%p1435) target = $region101
        $region100: #{tpu_custom_call.1} parent=84 // pred_region
          %v1438 = vld [vmem:[#allocation5] sm:$0xff]
          %v1439 = vld [vmem:[#allocation5 + $0x8] sm:$0xff]
          %v1440 = vld [vmem:[#allocation5 + $0x10] sm:$0xff]
          %v1441 = vld [vmem:[#allocation5 + $0x18] sm:$0xff]
          %v1442 = vld [vmem:[#allocation5 + $0x20] sm:$0xff]
          %v1443 = vld [vmem:[#allocation5 + $0x28] sm:$0xff]
          %v1444 = vld [vmem:[#allocation5 + $0x30] sm:$0xff]
          %v1445 = vld [vmem:[#allocation5 + $0x38] sm:$0xff]
          %v1446 = vld [vmem:[#allocation5 + $0x40] sm:$0xff]
          %v1447 = vld [vmem:[#allocation5 + $0x48] sm:$0xff]
          %v1448 = vld [vmem:[#allocation5 + $0x50] sm:$0xff]
          %v1449 = vld [vmem:[#allocation5 + $0x58] sm:$0xff]
          %v1450 = vld [vmem:[#allocation5 + $0x60] sm:$0xff]
          %v1451 = vld [vmem:[#allocation5 + $0x68] sm:$0xff]
          %v1452 = vld [vmem:[#allocation5 + $0x70] sm:$0xff]
          %v1453 = vld [vmem:[#allocation5 + $0x78] sm:$0xff]
          %v1454 = vld [vmem:[#allocation4] sm:$0xff]
          %v1455 = vld [vmem:[#allocation4 + $0x8] sm:$0xff]
          %v1456 = vld [vmem:[#allocation4 + $0x10] sm:$0xff]
          %v1457 = vld [vmem:[#allocation4 + $0x18] sm:$0xff]
          %v1458 = vld [vmem:[#allocation4 + $0x20] sm:$0xff]
          %v1459 = vld [vmem:[#allocation4 + $0x28] sm:$0xff]
          %v1460 = vld [vmem:[#allocation4 + $0x30] sm:$0xff]
          %v1461 = vld [vmem:[#allocation4 + $0x38] sm:$0xff]
          %v1462 = vld [vmem:[#allocation4 + $0x40] sm:$0xff]
          %v1463 = vld [vmem:[#allocation4 + $0x48] sm:$0xff]
          %v1464 = vld [vmem:[#allocation4 + $0x50] sm:$0xff]
          %v1465 = vld [vmem:[#allocation4 + $0x58] sm:$0xff]
          %v1466 = vld [vmem:[#allocation4 + $0x60] sm:$0xff]
          %v1467 = vld [vmem:[#allocation4 + $0x68] sm:$0xff]
          %v1468 = vld [vmem:[#allocation4 + $0x70] sm:$0xff]
          %v1469 = vld [vmem:[#allocation4 + $0x78] sm:$0xff]
          %v1470 = vrcp.pop %v1454
          %v1471 = vrcp.pop %v1455
          %v1472 = vrcp.pop %v1456
          %v1473 = vrcp.pop %v1457
          %v1474 = vrcp.pop %v1458
          %v1475 = vrcp.pop %v1459
          %v1476 = vrcp.pop %v1460
          %v1477 = vrcp.pop %v1461
          %v1478 = vrcp.pop %v1462
          %v1479 = vrcp.pop %v1463
          %v1480 = vrcp.pop %v1464
          %v1481 = vrcp.pop %v1465
          %v1482 = vrcp.pop %v1466
          %v1483 = vrcp.pop %v1467
          %v1484 = vrcp.pop %v1468
          %v1485 = vrcp.pop %v1469
          %1487 = vset.pattern.permute.xlu0 0
          %1488 = vperm.xlu0 %1487, %v1470
          %v1489 = vpop.permute.xlu0 %1488
          %1492 = vset.pattern.permute.xlu0 0
          %1493 = vperm.xlu0 %1492, %v1471
          %v1494 = vpop.permute.xlu0 %1493
          %1497 = vset.pattern.permute.xlu0 0
          %1498 = vperm.xlu0 %1497, %v1472
          %v1499 = vpop.permute.xlu0 %1498
          %1502 = vset.pattern.permute.xlu0 0
          %1503 = vperm.xlu0 %1502, %v1473
          %v1504 = vpop.permute.xlu0 %1503
          %1507 = vset.pattern.permute.xlu0 0
          %1508 = vperm.xlu0 %1507, %v1474
          %v1509 = vpop.permute.xlu0 %1508
          %1512 = vset.pattern.permute.xlu0 0
          %1513 = vperm.xlu0 %1512, %v1475
          %v1514 = vpop.permute.xlu0 %1513
          %1517 = vset.pattern.permute.xlu0 0
          %1518 = vperm.xlu0 %1517, %v1476
          %v1519 = vpop.permute.xlu0 %1518
          %1522 = vset.pattern.permute.xlu0 0
          %1523 = vperm.xlu0 %1522, %v1477
          %v1524 = vpop.permute.xlu0 %1523
          %1527 = vset.pattern.permute.xlu0 0
          %1528 = vperm.xlu0 %1527, %v1478
          %v1529 = vpop.permute.xlu0 %1528
          %1532 = vset.pattern.permute.xlu0 0
          %1533 = vperm.xlu0 %1532, %v1479
          %v1534 = vpop.permute.xlu0 %1533
          %1537 = vset.pattern.permute.xlu0 0
          %1538 = vperm.xlu0 %1537, %v1480
          %v1539 = vpop.permute.xlu0 %1538
          %1542 = vset.pattern.permute.xlu0 0
          %1543 = vperm.xlu0 %1542, %v1481
          %v1544 = vpop.permute.xlu0 %1543
          %1547 = vset.pattern.permute.xlu0 0
          %1548 = vperm.xlu0 %1547, %v1482
          %v1549 = vpop.permute.xlu0 %1548
          %1552 = vset.pattern.permute.xlu0 0
          %1553 = vperm.xlu0 %1552, %v1483
          %v1554 = vpop.permute.xlu0 %1553
          %1557 = vset.pattern.permute.xlu0 0
          %1558 = vperm.xlu0 %1557, %v1484
          %v1559 = vpop.permute.xlu0 %1558
          %1562 = vset.pattern.permute.xlu0 0
          %1563 = vperm.xlu0 %1562, %v1485
          %v1564 = vpop.permute.xlu0 %1563
          %v1566 = vmul.f32 %v1438, %v1489
          %v1567 = vmul.f32 %v1439, %v1494
          %v1568 = vmul.f32 %v1440, %v1499
          %v1569 = vmul.f32 %v1441, %v1504
          %v1570 = vmul.f32 %v1442, %v1509
          %v1571 = vmul.f32 %v1443, %v1514
          %v1572 = vmul.f32 %v1444, %v1519
          %v1573 = vmul.f32 %v1445, %v1524
          %v1574 = vmul.f32 %v1446, %v1529
          %v1575 = vmul.f32 %v1447, %v1534
          %v1576 = vmul.f32 %v1448, %v1539
          %v1577 = vmul.f32 %v1449, %v1544
          %v1578 = vmul.f32 %v1450, %v1549
          %v1579 = vmul.f32 %v1451, %v1554
          %v1580 = vmul.f32 %v1452, %v1559
          %v1581 = vmul.f32 %v1453, %v1564
          %s1582 = sld [smem:[#allocation6]]
          %1583 = vxpose.xlu0.b32.start [1/16] %v1566, 128
          %1584 = vxpose.xlu0.b32.cont [2/16] %v1567, 128
          %1585 = vxpose.xlu0.b32.cont [3/16] %v1568, 128
          %1586 = vxpose.xlu0.b32.cont [4/16] %v1569, 128
          %1587 = vxpose.xlu0.b32.cont [5/16] %v1570, 128
          %1588 = vxpose.xlu0.b32.cont [6/16] %v1571, 128
          %1589 = vxpose.xlu0.b32.cont [7/16] %v1572, 128
          %1590 = vxpose.xlu0.b32.cont [8/16] %v1573, 128
          %1591 = vxpose.xlu0.b32.cont [9/16] %v1574, 128
          %1592 = vxpose.xlu0.b32.cont [10/16] %v1575, 128
          %1593 = vxpose.xlu0.b32.cont [11/16] %v1576, 128
          %1594 = vxpose.xlu0.b32.cont [12/16] %v1577, 128
          %1595 = vxpose.xlu0.b32.cont [13/16] %v1578, 128
          %1596 = vxpose.xlu0.b32.cont [14/16] %v1579, 128
          %1597 = vxpose.xlu0.b32.cont [15/16] %v1580, 128
          %1598 = vxpose.xlu0.b32.end [16/16] %v1581, 128
          %v1599 = vpop.trf.xlu0
          %v1600 = vpop.trf.xlu0
          %v1601 = vpop.trf.xlu0
          %v1602 = vpop.trf.xlu0
          %v1603 = vpop.trf.xlu0
          %v1604 = vpop.trf.xlu0
          %v1605 = vpop.trf.xlu0
          %v1606 = vpop.trf.xlu0
          %v1607 = vpop.trf.xlu0
          %v1608 = vpop.trf.xlu0
          %v1609 = vpop.trf.xlu0
          %v1610 = vpop.trf.xlu0
          %v1611 = vpop.trf.xlu0
          %v1612 = vpop.trf.xlu0
          %v1613 = vpop.trf.xlu0
          %v1614 = vpop.trf.xlu0
          %v1615 = vstv %s1582
          %v1616 = vmul.f32 %v1615, %v1599
          %v1617 = vmul.f32 %v1615, %v1600
          %v1618 = vmul.f32 %v1615, %v1601
          %v1619 = vmul.f32 %v1615, %v1602
          %v1620 = vmul.f32 %v1615, %v1603
          %v1621 = vmul.f32 %v1615, %v1604
          %v1622 = vmul.f32 %v1615, %v1605
          %v1623 = vmul.f32 %v1615, %v1606
          %v1624 = vld [vmem:[%s376] sm:$0xff]
          %v1625 = vld [vmem:[%s376 + $0x8] sm:$0xff]
          %v1626 = vld [vmem:[%s376 + $0x10] sm:$0xff]
          %v1627 = vld [vmem:[%s376 + $0x18] sm:$0xff]
          %v1628 = vld [vmem:[%s376 + $0x20] sm:$0xff]
          %v1629 = vld [vmem:[%s376 + $0x28] sm:$0xff]
          %v1630 = vld [vmem:[%s376 + $0x30] sm:$0xff]
          %v1631 = vld [vmem:[%s376 + $0x38] sm:$0xff]
          %v1632 = vadd.f32 %v1616, %v1624
          %v1633 = vadd.f32 %v1617, %v1625
          %v1634 = vadd.f32 %v1618, %v1626
          %v1635 = vadd.f32 %v1619, %v1627
          %v1636 = vadd.f32 %v1620, %v1628
          %v1637 = vadd.f32 %v1621, %v1629
          %v1638 = vadd.f32 %v1622, %v1630
          %v1639 = vadd.f32 %v1623, %v1631
          %1640 = vst [vmem:[%s418] sm:$0xff] %v1632
          %1641 = vst [vmem:[%s418 + $0x8] sm:$0xff] %v1633
          %1642 = vst [vmem:[%s418 + $0x10] sm:$0xff] %v1634
          %1643 = vst [vmem:[%s418 + $0x18] sm:$0xff] %v1635
          %1644 = vst [vmem:[%s418 + $0x20] sm:$0xff] %v1636
          %1645 = vst [vmem:[%s418 + $0x28] sm:$0xff] %v1637
          %1646 = vst [vmem:[%s418 + $0x30] sm:$0xff] %v1638
          %1647 = vst [vmem:[%s418 + $0x38] sm:$0xff] %v1639
        $region101: #{tpu_custom_call.1} parent=84 // pred_fallthru
          _
        %s1648 = sand.u32 %s215, 1
        %s1649 = scalar_lea.sflag [#allocation9], %s1648
        %s1650 = sand.u32 %s215, 1
        %s1651 = smul.addr %s1650, 64
        %s1652 = scalar_lea.vmem [#allocation11], %s1651
        // Predicated region
        $region102: #{tpu_custom_call.1} parent=84 // pred_check
          %p1653 = pneg %p225
        $region103: #{tpu_custom_call.1} parent=84 // pred_check_branch
          %1655 = sbr.rel (%p1653) target = $region105
        $region104: #{tpu_custom_call.1} parent=84 // pred_region
          %1657 = vsyncadd %s1649, 0
          %s1658 = smul.addr %s30, 16
          %s1659 = sadd.s32 %s31, %s1658
          %s1660 = smul.addr %s1659, 8
          %s1661 = scalar_lea.hbm %s7, %s1660
          %s1662 = sshll.u32 %s1652, 4
          %s1663 = int_to_ptr.vmem [resolvable:$true] %s1662
          %s1664 = sshll.u32 %s1661, 4
          %s1665 = int_to_ptr.hbm [resolvable:$true] %s1664
          %1670 = dma.vmem_to_hbm [thread:$0]  %s1663, 1024, %s1665, %s1649, 128, 256, 8
        $region105: #{tpu_custom_call.1} parent=84 // pred_fallthru
          _
      $region85: #{tpu_custom_call.1} parent=5 // pred_fallthru
        _
      %p1671 = scmp.le.s32.totalorder 2, %s20
      // Predicated region
      $region106: #{tpu_custom_call.1} parent=5 // pred_check
        %p1672 = pneg %p1671
      $region107: #{tpu_custom_call.1} parent=5 // pred_check_branch
        %1674 = sbr.rel (%p1672) target = $region109
      $region108: #{tpu_custom_call.1} parent=5 // pred_region
        %s1675 = ssub.s32 %s20, 2
        // Predicated region
        $region110: #{tpu_custom_call.1} parent=108 // pred_check
          %p1676 = pneg %p231
        $region111: #{tpu_custom_call.1} parent=108 // pred_check_branch
          %1678 = sbr.rel (%p1676) target = $region113
        $region112: #{tpu_custom_call.1} parent=108 // pred_region
          %s1679 = sand.u32 %s216, 1
          %s1680 = scalar_lea.sflag [#allocation9], %s1679
          %s1681 = sand.u32 %s216, 1
          %s1682 = smul.addr %s1681, 64
          %s1683 = scalar_lea.vmem [#allocation11], %s1682
          %1685 = dma.done %s1680, 1024
        $region113: #{tpu_custom_call.1} parent=108 // pred_fallthru
          _
      $region109: #{tpu_custom_call.1} parent=5 // pred_fallthru
        _
    $region6: #{tpu_custom_call.1} parent=1 // loop_footer
      %s24 = sadd.s32 1, %s20
    $region7: #{tpu_custom_call.1} parent=1 // loop_footer_branch
      %19 = sbr.rel target = $region3
    $region8: #{tpu_custom_call.1} parent=1 // loop_exit
      _
    %1686 = vsyncpa [#allocation8], 1
    %s1687 = scalar_lea.sflag [#allocation8], 1
    %1688 = vsyncpa %s1687, 1
    %1689 = vsyncpa [#allocation9], 1
    %s1690 = scalar_lea.sflag [#allocation9], 1
    %1691 = vsyncpa %s1690, 1

</llo_original>
